<compile_context>
chip_gen: v7x
topology: tpu7x:2x2x1
jax: 0.10.0
libtpu: 0.0.40
codegen_flags: <defaults>
</compile_context>

<pallas_src>
import jax
import jax.numpy as jnp
from jax import lax
from jax.experimental import pallas as pl
from jax.experimental.pallas import tpu as pltpu


def _unet_block_kernel(x_ref, w_ref, b_ref, o_ref):
    """One grid step = one batch image.  3x3 SAME conv + bias + ReLU, NCHW.

    x_ref : (Cin, H+2, W+2)   bf16 VMEM  spatially padded input image
    w_ref : (Cout*Cin*3*3,)   f32  SMEM  fully folded (residual + BN) conv weights
    b_ref : (Cout,)           f32  SMEM  fully folded bias
    o_ref : (Cout, H, W)                 output image
    """
    Cin = x_ref.shape[0]
    Cout, H, W = o_ref.shape

    # One f32 accumulator per output channel; at (16,16) each is 2 vregs, so even
    # Cout=8 plus one live input plane stays far below the 64-vreg file.
    # TODO(synk): for much larger H*W tiles move these into a VMEM scratch buffer.
    acc = [jnp.zeros((H, W), jnp.float32) for _ in range(Cout)]

    for ci in range(Cin):
        # Load + upcast each input-channel plane exactly once per step.
        plane = x_ref[ci].astype(jnp.float32)                       # (H+2, W+2)
        for kh in range(3):
            for kw in range(3):
                # Shifted tap window (W on the lane axis), computed once and
                # reused across all Cout output channels.
                patch = plane[kh:kh + H, kw:kw + W]                 # (H, W)
                base = (ci * 3 + kh) * 3 + kw
                for co in range(Cout):
                    acc[co] = acc[co] + w_ref[co * Cin * 9 + base] * patch

    for co in range(Cout):
        o_ref[co] = jnp.maximum(acc[co] + b_ref[co], 0.0).astype(o_ref.dtype)


def unet_block_forward(x_nchw, p, *, use_residual=True, use_bn=True, eps=1e-5):
    """Fused UnetBlock forward (eval mode). NCHW in / NCHW out, no transposes."""
    N, Cin, H, W = x_nchw.shape
    Cout = p["w_conv1"].shape[0]
    residual = bool(use_residual and Cin == Cout)

    if Cin * Cout > 1024:
        # TODO(synk): implement the MXU (channels-on-lanes) path for large C.
        raise NotImplementedError("unrolled VPU path targets small Cin*Cout only")

    # ---- wrapper-side folding (one tiny XLA fusion) ----------------------------
    w = p["w_conv1"]                                        # (Cout, Cin, 3, 3)
    b = p["b_conv1"]
    if residual:                                            # identity + 1x1 adapter
        w = w.at[:, :, 1, 1].add(p["w_adapter"][:, :, 0, 0]
                                 + jnp.eye(Cin, dtype=w.dtype))
        b = b + p["b_adapter"]
    if use_bn:                                              # eval-mode BatchNorm
        scale = p["gamma"] * lax.rsqrt(p["running_var"] + eps)
        b = b * scale + (p["beta"] - p["running_mean"] * scale)
        w = w * scale[:, None, None, None]
    # Weights/bias stay f32 (BN-folded scales keep precision) and are tiny; they go
    # to SMEM as 1-D scalar tables (1-D avoids the 2-D SMEM padding blow-up).
    w_flat = w.reshape(-1).astype(jnp.float32)              # (Cout*Cin*9,)
    b = b.astype(jnp.float32)                               # (Cout,)

    # ---- input prep: single fused SAME-pad + bf16 downcast, still NCHW ----------
    # (No NHWC transpose, no channel padding, no halo-tile stack.)
    xpad = jnp.pad(x_nchw, ((0, 0), (0, 0), (1, 1), (1, 1))).astype(jnp.bfloat16)

    # One whole (tiny) image per grid step: disjoint blocks, input read once, grid
    # overhead paid only N times, and N=2 feeds both v7x TensorCores.  Per-image
    # VMEM is a few hundred KiB, far under every generation's budget, so no row
    # tiling / vmem_limit override is needed here.
    out = pl.pallas_call(
        _unet_block_kernel,
        out_shape=jax.ShapeDtypeStruct((N, Cout, H, W), x_nchw.dtype),
        grid=(N,),
        in_specs=[
            pl.BlockSpec((pl.Squeezed(), Cin, H + 2, W + 2),
                         lambda n: (n, 0, 0, 0)),
            pl.BlockSpec(memory_space=pltpu.MemorySpace.SMEM),
            pl.BlockSpec(memory_space=pltpu.MemorySpace.SMEM),
        ],
        out_specs=pl.BlockSpec((pl.Squeezed(), Cout, H, W),
                               lambda n: (n, 0, 0, 0)),
        compiler_params=pltpu.CompilerParams(
            dimension_semantics=("parallel",)),
    )(xpad, w_flat, b)
    return out


def ref_forward(x, p, *, use_residual=True, use_bn=True, eps=1e-5):
    """Pure-JAX reference (NCHW), mirrors the PyTorch forward in eval mode."""
    dn = ("NCHW", "OIHW", "NCHW")
    Cin, Cout = x.shape[1], p["w_conv1"].shape[0]
    y = lax.conv_general_dilated(x, p["w_conv1"], (1, 1), "SAME",
                                 dimension_numbers=dn)
    y = y + p["b_conv1"].reshape(1, -1, 1, 1)
    if use_residual and Cin == Cout:
        a = lax.conv_general_dilated(x, p["w_adapter"], (1, 1), "SAME",
                                     dimension_numbers=dn)
        a = a + p["b_adapter"].reshape(1, -1, 1, 1)
        y = y + x + a
    if use_bn:
        scale = p["gamma"] / jnp.sqrt(p["running_var"] + eps)
        bias = p["beta"] - p["running_mean"] * scale
        y = y * scale.reshape(1, -1, 1, 1) + bias.reshape(1, -1, 1, 1)
    return jnp.maximum(y, 0.0)


def init_params(key, in_channels, out_channels, kernel_size=3):
    ks = jax.random.split(key, 6)
    k = 1.0 / (in_channels * kernel_size * kernel_size)
    bound = k ** 0.5
    ka = (1.0 / in_channels) ** 0.5
    return {
        "w_conv1": jax.random.uniform(
            ks[0], (out_channels, in_channels, kernel_size, kernel_size),
            jnp.float32, -bound, bound),
        "b_conv1": jax.random.uniform(ks[1], (out_channels,), jnp.float32,
                                      -bound, bound),
        "w_adapter": jax.random.uniform(ks[2], (out_channels, in_channels, 1, 1),
                                        jnp.float32, -ka, ka),
        "b_adapter": jax.random.uniform(ks[3], (out_channels,), jnp.float32,
                                        -ka, ka),
        "gamma": jnp.ones((out_channels,), jnp.float32),
        "beta": jnp.zeros((out_channels,), jnp.float32),
        "running_mean": 0.1 * jax.random.normal(ks[4], (out_channels,),
                                                jnp.float32),
        "running_var": 1.0 + 0.1 * jax.random.uniform(ks[5], (out_channels,),
                                                      jnp.float32),
    }


if __name__ == "__main__":
    key = jax.random.PRNGKey(0)
    k_x, k_p1, k_p2 = jax.random.split(key, 3)

    N, C, H, W = 2, 4, 16, 16
    x = jax.random.normal(k_x, (N, C, H, W), jnp.float32)
    # The bf16 activation DMA is the only intended numeric deviation from the f32
    # module, so the strict check compares against a reference fed the same
    # bf16-quantised activations; a loose check covers the full-precision input.
    xq = x.astype(jnp.bfloat16).astype(jnp.float32)

    # Case 1: residual path (in_channels == out_channels).
    params = init_params(k_p1, C, C)
    out = jax.block_until_ready(unet_block_forward(x, params))
    ref_q = ref_forward(xq, params)
    assert out.shape == ref_q.shape
    err = float(jnp.max(jnp.abs(out - ref_q)))
    assert jnp.allclose(out, ref_q, rtol=1e-3, atol=1e-3), err
    ref_f = ref_forward(x, params)
    assert jnp.allclose(out, ref_f, rtol=5e-2, atol=5e-2), \
        float(jnp.max(jnp.abs(out - ref_f)))

    # Case 2: in_channels != out_channels -> no identity/adapter residual add.
    params2 = init_params(k_p2, C, 8)
    out2 = jax.block_until_ready(unet_block_forward(x, params2))
    ref2_q = ref_forward(xq, params2)
    assert out2.shape == ref2_q.shape
    err2 = float(jnp.max(jnp.abs(out2 - ref2_q)))
    assert jnp.allclose(out2, ref2_q, rtol=1e-3, atol=1e-3), err2

    print("KERNEL_OK")
</pallas_src>

<mosaic_0001>
module attributes {stable_mosaic.version = 11 : i64} {
  func.func @_unet_block_kernel(%arg0: i32, %arg1: memref<1x4x18x18xbf16, #tpu.memory_space<vmem>>, %arg2: memref<144xf32, #tpu.memory_space<smem>>, %arg3: memref<4xf32, #tpu.memory_space<smem>>, %arg4: memref<1x4x16x16xf32, #tpu.memory_space<vmem>>) attributes {dimension_semantics = [#tpu.dimension_semantics<parallel>], iteration_bounds = array<i64: 2>, scalar_prefetch = 0 : i64, scratch_operands = 0 : i64, tpu.core_type = #tpu.core_type<tc>, window_params = [{transform_indices = @transform_0, window_bounds = array<i64: 1, 4, 18, 18>}, {transform_indices = @transform_1, window_bounds = array<i64: 144>}, {transform_indices = @transform_2, window_bounds = array<i64: 4>}, {transform_indices = @transform_3, window_bounds = array<i64: 1, 4, 16, 16>}]} {
    %cst = arith.constant 0.000000e+00 : f32
    %0 = vector.broadcast %cst : f32 to vector<16x16xf32>
    %cst_0 = arith.constant 0.000000e+00 : f32
    %1 = vector.broadcast %cst_0 : f32 to vector<16x16xf32>
    %cst_1 = arith.constant 0.000000e+00 : f32
    %2 = vector.broadcast %cst_1 : f32 to vector<16x16xf32>
    %cst_2 = arith.constant 0.000000e+00 : f32
    %3 = vector.broadcast %cst_2 : f32 to vector<16x16xf32>
    %c0 = arith.constant 0 : index
    %c0_3 = arith.constant 0 : index
    %c0_4 = arith.constant 0 : index
    %c0_5 = arith.constant 0 : index
    %4 = vector.load %arg1[%c0, %c0_3, %c0_4, %c0_5] : memref<1x4x18x18xbf16, #tpu.memory_space<vmem>>, vector<1x1x18x18xbf16>
    %5 = vector.shape_cast %4 : vector<1x1x18x18xbf16> to vector<18x18xbf16>
    %6 = arith.extf %5 : vector<18x18xbf16> to vector<18x18xf32>
    %7 = vector.extract_strided_slice %6 {offsets = [0, 0], sizes = [16, 16], strides = [1, 1]} : vector<18x18xf32> to vector<16x16xf32>
    %c0_6 = arith.constant 0 : index
    %8 = memref.load %arg2[%c0_6] : memref<144xf32, #tpu.memory_space<smem>>
    %9 = vector.broadcast %8 : f32 to vector<16x16xf32>
    %10 = arith.mulf %9, %7 : vector<16x16xf32>
    %11 = arith.addf %0, %10 : vector<16x16xf32>
    %c36 = arith.constant 36 : index
    %12 = memref.load %arg2[%c36] : memref<144xf32, #tpu.memory_space<smem>>
    %13 = vector.broadcast %12 : f32 to vector<16x16xf32>
    %14 = arith.mulf %13, %7 : vector<16x16xf32>
    %15 = arith.addf %1, %14 : vector<16x16xf32>
    %c72 = arith.constant 72 : index
    %16 = memref.load %arg2[%c72] : memref<144xf32, #tpu.memory_space<smem>>
    %17 = vector.broadcast %16 : f32 to vector<16x16xf32>
    %18 = arith.mulf %17, %7 : vector<16x16xf32>
    %19 = arith.addf %2, %18 : vector<16x16xf32>
    %c108 = arith.constant 108 : index
    %20 = memref.load %arg2[%c108] : memref<144xf32, #tpu.memory_space<smem>>
    %21 = vector.broadcast %20 : f32 to vector<16x16xf32>
    %22 = arith.mulf %21, %7 : vector<16x16xf32>
    %23 = arith.addf %3, %22 : vector<16x16xf32>
    %24 = vector.extract_strided_slice %6 {offsets = [0, 1], sizes = [16, 16], strides = [1, 1]} : vector<18x18xf32> to vector<16x16xf32>
    %c1 = arith.constant 1 : index
    %25 = memref.load %arg2[%c1] : memref<144xf32, #tpu.memory_space<smem>>
    %26 = vector.broadcast %25 : f32 to vector<16x16xf32>
    %27 = arith.mulf %26, %24 : vector<16x16xf32>
    %28 = arith.addf %11, %27 : vector<16x16xf32>
    %c37 = arith.constant 37 : index
    %29 = memref.load %arg2[%c37] : memref<144xf32, #tpu.memory_space<smem>>
    %30 = vector.broadcast %29 : f32 to vector<16x16xf32>
    %31 = arith.mulf %30, %24 : vector<16x16xf32>
    %32 = arith.addf %15, %31 : vector<16x16xf32>
    %c73 = arith.constant 73 : index
    %33 = memref.load %arg2[%c73] : memref<144xf32, #tpu.memory_space<smem>>
    %34 = vector.broadcast %33 : f32 to vector<16x16xf32>
    %35 = arith.mulf %34, %24 : vector<16x16xf32>
    %36 = arith.addf %19, %35 : vector<16x16xf32>
    %c109 = arith.constant 109 : index
    %37 = memref.load %arg2[%c109] : memref<144xf32, #tpu.memory_space<smem>>
    %38 = vector.broadcast %37 : f32 to vector<16x16xf32>
    %39 = arith.mulf %38, %24 : vector<16x16xf32>
    %40 = arith.addf %23, %39 : vector<16x16xf32>
    %41 = vector.extract_strided_slice %6 {offsets = [0, 2], sizes = [16, 16], strides = [1, 1]} : vector<18x18xf32> to vector<16x16xf32>
    %c2 = arith.constant 2 : index
    %42 = memref.load %arg2[%c2] : memref<144xf32, #tpu.memory_space<smem>>
    %43 = vector.broadcast %42 : f32 to vector<16x16xf32>
    %44 = arith.mulf %43, %41 : vector<16x16xf32>
    %45 = arith.addf %28, %44 : vector<16x16xf32>
    %c38 = arith.constant 38 : index
    %46 = memref.load %arg2[%c38] : memref<144xf32, #tpu.memory_space<smem>>
    %47 = vector.broadcast %46 : f32 to vector<16x16xf32>
    %48 = arith.mulf %47, %41 : vector<16x16xf32>
    %49 = arith.addf %32, %48 : vector<16x16xf32>
    %c74 = arith.constant 74 : index
    %50 = memref.load %arg2[%c74] : memref<144xf32, #tpu.memory_space<smem>>
    %51 = vector.broadcast %50 : f32 to vector<16x16xf32>
    %52 = arith.mulf %51, %41 : vector<16x16xf32>
    %53 = arith.addf %36, %52 : vector<16x16xf32>
    %c110 = arith.constant 110 : index
    %54 = memref.load %arg2[%c110] : memref<144xf32, #tpu.memory_space<smem>>
    %55 = vector.broadcast %54 : f32 to vector<16x16xf32>
    %56 = arith.mulf %55, %41 : vector<16x16xf32>
    %57 = arith.addf %40, %56 : vector<16x16xf32>
    %58 = vector.extract_strided_slice %6 {offsets = [1, 0], sizes = [16, 16], strides = [1, 1]} : vector<18x18xf32> to vector<16x16xf32>
    %c3 = arith.constant 3 : index
    %59 = memref.load %arg2[%c3] : memref<144xf32, #tpu.memory_space<smem>>
    %60 = vector.broadcast %59 : f32 to vector<16x16xf32>
    %61 = arith.mulf %60, %58 : vector<16x16xf32>
    %62 = arith.addf %45, %61 : vector<16x16xf32>
    %c39 = arith.constant 39 : index
    %63 = memref.load %arg2[%c39] : memref<144xf32, #tpu.memory_space<smem>>
    %64 = vector.broadcast %63 : f32 to vector<16x16xf32>
    %65 = arith.mulf %64, %58 : vector<16x16xf32>
    %66 = arith.addf %49, %65 : vector<16x16xf32>
    %c75 = arith.constant 75 : index
    %67 = memref.load %arg2[%c75] : memref<144xf32, #tpu.memory_space<smem>>
    %68 = vector.broadcast %67 : f32 to vector<16x16xf32>
    %69 = arith.mulf %68, %58 : vector<16x16xf32>
    %70 = arith.addf %53, %69 : vector<16x16xf32>
    %c111 = arith.constant 111 : index
    %71 = memref.load %arg2[%c111] : memref<144xf32, #tpu.memory_space<smem>>
    %72 = vector.broadcast %71 : f32 to vector<16x16xf32>
    %73 = arith.mulf %72, %58 : vector<16x16xf32>
    %74 = arith.addf %57, %73 : vector<16x16xf32>
    %75 = vector.extract_strided_slice %6 {offsets = [1, 1], sizes = [16, 16], strides = [1, 1]} : vector<18x18xf32> to vector<16x16xf32>
    %c4 = arith.constant 4 : index
    %76 = memref.load %arg2[%c4] : memref<144xf32, #tpu.memory_space<smem>>
    %77 = vector.broadcast %76 : f32 to vector<16x16xf32>
    %78 = arith.mulf %77, %75 : vector<16x16xf32>
    %79 = arith.addf %62, %78 : vector<16x16xf32>
    %c40 = arith.constant 40 : index
    %80 = memref.load %arg2[%c40] : memref<144xf32, #tpu.memory_space<smem>>
    %81 = vector.broadcast %80 : f32 to vector<16x16xf32>
    %82 = arith.mulf %81, %75 : vector<16x16xf32>
    %83 = arith.addf %66, %82 : vector<16x16xf32>
    %c76 = arith.constant 76 : index
    %84 = memref.load %arg2[%c76] : memref<144xf32, #tpu.memory_space<smem>>
    %85 = vector.broadcast %84 : f32 to vector<16x16xf32>
    %86 = arith.mulf %85, %75 : vector<16x16xf32>
    %87 = arith.addf %70, %86 : vector<16x16xf32>
    %c112 = arith.constant 112 : index
    %88 = memref.load %arg2[%c112] : memref<144xf32, #tpu.memory_space<smem>>
    %89 = vector.broadcast %88 : f32 to vector<16x16xf32>
    %90 = arith.mulf %89, %75 : vector<16x16xf32>
    %91 = arith.addf %74, %90 : vector<16x16xf32>
    %92 = vector.extract_strided_slice %6 {offsets = [1, 2], sizes = [16, 16], strides = [1, 1]} : vector<18x18xf32> to vector<16x16xf32>
    %c5 = arith.constant 5 : index
    %93 = memref.load %arg2[%c5] : memref<144xf32, #tpu.memory_space<smem>>
    %94 = vector.broadcast %93 : f32 to vector<16x16xf32>
    %95 = arith.mulf %94, %92 : vector<16x16xf32>
    %96 = arith.addf %79, %95 : vector<16x16xf32>
    %c41 = arith.constant 41 : index
    %97 = memref.load %arg2[%c41] : memref<144xf32, #tpu.memory_space<smem>>
    %98 = vector.broadcast %97 : f32 to vector<16x16xf32>
    %99 = arith.mulf %98, %92 : vector<16x16xf32>
    %100 = arith.addf %83, %99 : vector<16x16xf32>
    %c77 = arith.constant 77 : index
    %101 = memref.load %arg2[%c77] : memref<144xf32, #tpu.memory_space<smem>>
    %102 = vector.broadcast %101 : f32 to vector<16x16xf32>
    %103 = arith.mulf %102, %92 : vector<16x16xf32>
    %104 = arith.addf %87, %103 : vector<16x16xf32>
    %c113 = arith.constant 113 : index
    %105 = memref.load %arg2[%c113] : memref<144xf32, #tpu.memory_space<smem>>
    %106 = vector.broadcast %105 : f32 to vector<16x16xf32>
    %107 = arith.mulf %106, %92 : vector<16x16xf32>
    %108 = arith.addf %91, %107 : vector<16x16xf32>
    %109 = vector.extract_strided_slice %6 {offsets = [2, 0], sizes = [16, 16], strides = [1, 1]} : vector<18x18xf32> to vector<16x16xf32>
    %c6 = arith.constant 6 : index
    %110 = memref.load %arg2[%c6] : memref<144xf32, #tpu.memory_space<smem>>
    %111 = vector.broadcast %110 : f32 to vector<16x16xf32>
    %112 = arith.mulf %111, %109 : vector<16x16xf32>
    %113 = arith.addf %96, %112 : vector<16x16xf32>
    %c42 = arith.constant 42 : index
    %114 = memref.load %arg2[%c42] : memref<144xf32, #tpu.memory_space<smem>>
    %115 = vector.broadcast %114 : f32 to vector<16x16xf32>
    %116 = arith.mulf %115, %109 : vector<16x16xf32>
    %117 = arith.addf %100, %116 : vector<16x16xf32>
    %c78 = arith.constant 78 : index
    %118 = memref.load %arg2[%c78] : memref<144xf32, #tpu.memory_space<smem>>
    %119 = vector.broadcast %118 : f32 to vector<16x16xf32>
    %120 = arith.mulf %119, %109 : vector<16x16xf32>
    %121 = arith.addf %104, %120 : vector<16x16xf32>
    %c114 = arith.constant 114 : index
    %122 = memref.load %arg2[%c114] : memref<144xf32, #tpu.memory_space<smem>>
    %123 = vector.broadcast %122 : f32 to vector<16x16xf32>
    %124 = arith.mulf %123, %109 : vector<16x16xf32>
    %125 = arith.addf %108, %124 : vector<16x16xf32>
    %126 = vector.extract_strided_slice %6 {offsets = [2, 1], sizes = [16, 16], strides = [1, 1]} : vector<18x18xf32> to vector<16x16xf32>
    %c7 = arith.constant 7 : index
    %127 = memref.load %arg2[%c7] : memref<144xf32, #tpu.memory_space<smem>>
    %128 = vector.broadcast %127 : f32 to vector<16x16xf32>
    %129 = arith.mulf %128, %126 : vector<16x16xf32>
    %130 = arith.addf %113, %129 : vector<16x16xf32>
    %c43 = arith.constant 43 : index
    %131 = memref.load %arg2[%c43] : memref<144xf32, #tpu.memory_space<smem>>
    %132 = vector.broadcast %131 : f32 to vector<16x16xf32>
    %133 = arith.mulf %132, %126 : vector<16x16xf32>
    %134 = arith.addf %117, %133 : vector<16x16xf32>
    %c79 = arith.constant 79 : index
    %135 = memref.load %arg2[%c79] : memref<144xf32, #tpu.memory_space<smem>>
    %136 = vector.broadcast %135 : f32 to vector<16x16xf32>
    %137 = arith.mulf %136, %126 : vector<16x16xf32>
    %138 = arith.addf %121, %137 : vector<16x16xf32>
    %c115 = arith.constant 115 : index
    %139 = memref.load %arg2[%c115] : memref<144xf32, #tpu.memory_space<smem>>
    %140 = vector.broadcast %139 : f32 to vector<16x16xf32>
    %141 = arith.mulf %140, %126 : vector<16x16xf32>
    %142 = arith.addf %125, %141 : vector<16x16xf32>
    %143 = vector.extract_strided_slice %6 {offsets = [2, 2], sizes = [16, 16], strides = [1, 1]} : vector<18x18xf32> to vector<16x16xf32>
    %c8 = arith.constant 8 : index
    %144 = memref.load %arg2[%c8] : memref<144xf32, #tpu.memory_space<smem>>
    %145 = vector.broadcast %144 : f32 to vector<16x16xf32>
    %146 = arith.mulf %145, %143 : vector<16x16xf32>
    %147 = arith.addf %130, %146 : vector<16x16xf32>
    %c44 = arith.constant 44 : index
    %148 = memref.load %arg2[%c44] : memref<144xf32, #tpu.memory_space<smem>>
    %149 = vector.broadcast %148 : f32 to vector<16x16xf32>
    %150 = arith.mulf %149, %143 : vector<16x16xf32>
    %151 = arith.addf %134, %150 : vector<16x16xf32>
    %c80 = arith.constant 80 : index
    %152 = memref.load %arg2[%c80] : memref<144xf32, #tpu.memory_space<smem>>
    %153 = vector.broadcast %152 : f32 to vector<16x16xf32>
    %154 = arith.mulf %153, %143 : vector<16x16xf32>
    %155 = arith.addf %138, %154 : vector<16x16xf32>
    %c116 = arith.constant 116 : index
    %156 = memref.load %arg2[%c116] : memref<144xf32, #tpu.memory_space<smem>>
    %157 = vector.broadcast %156 : f32 to vector<16x16xf32>
    %158 = arith.mulf %157, %143 : vector<16x16xf32>
    %159 = arith.addf %142, %158 : vector<16x16xf32>
    %c0_7 = arith.constant 0 : index
    %c1_8 = arith.constant 1 : index
    %c0_9 = arith.constant 0 : index
    %c0_10 = arith.constant 0 : index
    %160 = vector.load %arg1[%c0_7, %c1_8, %c0_9, %c0_10] : memref<1x4x18x18xbf16, #tpu.memory_space<vmem>>, vector<1x1x18x18xbf16>
    %161 = vector.shape_cast %160 : vector<1x1x18x18xbf16> to vector<18x18xbf16>
    %162 = arith.extf %161 : vector<18x18xbf16> to vector<18x18xf32>
    %163 = vector.extract_strided_slice %162 {offsets = [0, 0], sizes = [16, 16], strides = [1, 1]} : vector<18x18xf32> to vector<16x16xf32>
    %c9 = arith.constant 9 : index
    %164 = memref.load %arg2[%c9] : memref<144xf32, #tpu.memory_space<smem>>
    %165 = vector.broadcast %164 : f32 to vector<16x16xf32>
    %166 = arith.mulf %165, %163 : vector<16x16xf32>
    %167 = arith.addf %147, %166 : vector<16x16xf32>
    %c45 = arith.constant 45 : index
    %168 = memref.load %arg2[%c45] : memref<144xf32, #tpu.memory_space<smem>>
    %169 = vector.broadcast %168 : f32 to vector<16x16xf32>
    %170 = arith.mulf %169, %163 : vector<16x16xf32>
    %171 = arith.addf %151, %170 : vector<16x16xf32>
    %c81 = arith.constant 81 : index
    %172 = memref.load %arg2[%c81] : memref<144xf32, #tpu.memory_space<smem>>
    %173 = vector.broadcast %172 : f32 to vector<16x16xf32>
    %174 = arith.mulf %173, %163 : vector<16x16xf32>
    %175 = arith.addf %155, %174 : vector<16x16xf32>
    %c117 = arith.constant 117 : index
    %176 = memref.load %arg2[%c117] : memref<144xf32, #tpu.memory_space<smem>>
    %177 = vector.broadcast %176 : f32 to vector<16x16xf32>
    %178 = arith.mulf %177, %163 : vector<16x16xf32>
    %179 = arith.addf %159, %178 : vector<16x16xf32>
    %180 = vector.extract_strided_slice %162 {offsets = [0, 1], sizes = [16, 16], strides = [1, 1]} : vector<18x18xf32> to vector<16x16xf32>
    %c10 = arith.constant 10 : index
    %181 = memref.load %arg2[%c10] : memref<144xf32, #tpu.memory_space<smem>>
    %182 = vector.broadcast %181 : f32 to vector<16x16xf32>
    %183 = arith.mulf %182, %180 : vector<16x16xf32>
    %184 = arith.addf %167, %183 : vector<16x16xf32>
    %c46 = arith.constant 46 : index
    %185 = memref.load %arg2[%c46] : memref<144xf32, #tpu.memory_space<smem>>
    %186 = vector.broadcast %185 : f32 to vector<16x16xf32>
    %187 = arith.mulf %186, %180 : vector<16x16xf32>
    %188 = arith.addf %171, %187 : vector<16x16xf32>
    %c82 = arith.constant 82 : index
    %189 = memref.load %arg2[%c82] : memref<144xf32, #tpu.memory_space<smem>>
    %190 = vector.broadcast %189 : f32 to vector<16x16xf32>
    %191 = arith.mulf %190, %180 : vector<16x16xf32>
    %192 = arith.addf %175, %191 : vector<16x16xf32>
    %c118 = arith.constant 118 : index
    %193 = memref.load %arg2[%c118] : memref<144xf32, #tpu.memory_space<smem>>
    %194 = vector.broadcast %193 : f32 to vector<16x16xf32>
    %195 = arith.mulf %194, %180 : vector<16x16xf32>
    %196 = arith.addf %179, %195 : vector<16x16xf32>
    %197 = vector.extract_strided_slice %162 {offsets = [0, 2], sizes = [16, 16], strides = [1, 1]} : vector<18x18xf32> to vector<16x16xf32>
    %c11 = arith.constant 11 : index
    %198 = memref.load %arg2[%c11] : memref<144xf32, #tpu.memory_space<smem>>
    %199 = vector.broadcast %198 : f32 to vector<16x16xf32>
    %200 = arith.mulf %199, %197 : vector<16x16xf32>
    %201 = arith.addf %184, %200 : vector<16x16xf32>
    %c47 = arith.constant 47 : index
    %202 = memref.load %arg2[%c47] : memref<144xf32, #tpu.memory_space<smem>>
    %203 = vector.broadcast %202 : f32 to vector<16x16xf32>
    %204 = arith.mulf %203, %197 : vector<16x16xf32>
    %205 = arith.addf %188, %204 : vector<16x16xf32>
    %c83 = arith.constant 83 : index
    %206 = memref.load %arg2[%c83] : memref<144xf32, #tpu.memory_space<smem>>
    %207 = vector.broadcast %206 : f32 to vector<16x16xf32>
    %208 = arith.mulf %207, %197 : vector<16x16xf32>
    %209 = arith.addf %192, %208 : vector<16x16xf32>
    %c119 = arith.constant 119 : index
    %210 = memref.load %arg2[%c119] : memref<144xf32, #tpu.memory_space<smem>>
    %211 = vector.broadcast %210 : f32 to vector<16x16xf32>
    %212 = arith.mulf %211, %197 : vector<16x16xf32>
    %213 = arith.addf %196, %212 : vector<16x16xf32>
    %214 = vector.extract_strided_slice %162 {offsets = [1, 0], sizes = [16, 16], strides = [1, 1]} : vector<18x18xf32> to vector<16x16xf32>
    %c12 = arith.constant 12 : index
    %215 = memref.load %arg2[%c12] : memref<144xf32, #tpu.memory_space<smem>>
    %216 = vector.broadcast %215 : f32 to vector<16x16xf32>
    %217 = arith.mulf %216, %214 : vector<16x16xf32>
    %218 = arith.addf %201, %217 : vector<16x16xf32>
    %c48 = arith.constant 48 : index
    %219 = memref.load %arg2[%c48] : memref<144xf32, #tpu.memory_space<smem>>
    %220 = vector.broadcast %219 : f32 to vector<16x16xf32>
    %221 = arith.mulf %220, %214 : vector<16x16xf32>
    %222 = arith.addf %205, %221 : vector<16x16xf32>
    %c84 = arith.constant 84 : index
    %223 = memref.load %arg2[%c84] : memref<144xf32, #tpu.memory_space<smem>>
    %224 = vector.broadcast %223 : f32 to vector<16x16xf32>
    %225 = arith.mulf %224, %214 : vector<16x16xf32>
    %226 = arith.addf %209, %225 : vector<16x16xf32>
    %c120 = arith.constant 120 : index
    %227 = memref.load %arg2[%c120] : memref<144xf32, #tpu.memory_space<smem>>
    %228 = vector.broadcast %227 : f32 to vector<16x16xf32>
    %229 = arith.mulf %228, %214 : vector<16x16xf32>
    %230 = arith.addf %213, %229 : vector<16x16xf32>
    %231 = vector.extract_strided_slice %162 {offsets = [1, 1], sizes = [16, 16], strides = [1, 1]} : vector<18x18xf32> to vector<16x16xf32>
    %c13 = arith.constant 13 : index
    %232 = memref.load %arg2[%c13] : memref<144xf32, #tpu.memory_space<smem>>
    %233 = vector.broadcast %232 : f32 to vector<16x16xf32>
    %234 = arith.mulf %233, %231 : vector<16x16xf32>
    %235 = arith.addf %218, %234 : vector<16x16xf32>
    %c49 = arith.constant 49 : index
    %236 = memref.load %arg2[%c49] : memref<144xf32, #tpu.memory_space<smem>>
    %237 = vector.broadcast %236 : f32 to vector<16x16xf32>
    %238 = arith.mulf %237, %231 : vector<16x16xf32>
    %239 = arith.addf %222, %238 : vector<16x16xf32>
    %c85 = arith.constant 85 : index
    %240 = memref.load %arg2[%c85] : memref<144xf32, #tpu.memory_space<smem>>
    %241 = vector.broadcast %240 : f32 to vector<16x16xf32>
    %242 = arith.mulf %241, %231 : vector<16x16xf32>
    %243 = arith.addf %226, %242 : vector<16x16xf32>
    %c121 = arith.constant 121 : index
    %244 = memref.load %arg2[%c121] : memref<144xf32, #tpu.memory_space<smem>>
    %245 = vector.broadcast %244 : f32 to vector<16x16xf32>
    %246 = arith.mulf %245, %231 : vector<16x16xf32>
    %247 = arith.addf %230, %246 : vector<16x16xf32>
    %248 = vector.extract_strided_slice %162 {offsets = [1, 2], sizes = [16, 16], strides = [1, 1]} : vector<18x18xf32> to vector<16x16xf32>
    %c14 = arith.constant 14 : index
    %249 = memref.load %arg2[%c14] : memref<144xf32, #tpu.memory_space<smem>>
    %250 = vector.broadcast %249 : f32 to vector<16x16xf32>
    %251 = arith.mulf %250, %248 : vector<16x16xf32>
    %252 = arith.addf %235, %251 : vector<16x16xf32>
    %c50 = arith.constant 50 : index
    %253 = memref.load %arg2[%c50] : memref<144xf32, #tpu.memory_space<smem>>
    %254 = vector.broadcast %253 : f32 to vector<16x16xf32>
    %255 = arith.mulf %254, %248 : vector<16x16xf32>
    %256 = arith.addf %239, %255 : vector<16x16xf32>
    %c86 = arith.constant 86 : index
    %257 = memref.load %arg2[%c86] : memref<144xf32, #tpu.memory_space<smem>>
    %258 = vector.broadcast %257 : f32 to vector<16x16xf32>
    %259 = arith.mulf %258, %248 : vector<16x16xf32>
    %260 = arith.addf %243, %259 : vector<16x16xf32>
    %c122 = arith.constant 122 : index
    %261 = memref.load %arg2[%c122] : memref<144xf32, #tpu.memory_space<smem>>
    %262 = vector.broadcast %261 : f32 to vector<16x16xf32>
    %263 = arith.mulf %262, %248 : vector<16x16xf32>
    %264 = arith.addf %247, %263 : vector<16x16xf32>
    %265 = vector.extract_strided_slice %162 {offsets = [2, 0], sizes = [16, 16], strides = [1, 1]} : vector<18x18xf32> to vector<16x16xf32>
    %c15 = arith.constant 15 : index
    %266 = memref.load %arg2[%c15] : memref<144xf32, #tpu.memory_space<smem>>
    %267 = vector.broadcast %266 : f32 to vector<16x16xf32>
    %268 = arith.mulf %267, %265 : vector<16x16xf32>
    %269 = arith.addf %252, %268 : vector<16x16xf32>
    %c51 = arith.constant 51 : index
    %270 = memref.load %arg2[%c51] : memref<144xf32, #tpu.memory_space<smem>>
    %271 = vector.broadcast %270 : f32 to vector<16x16xf32>
    %272 = arith.mulf %271, %265 : vector<16x16xf32>
    %273 = arith.addf %256, %272 : vector<16x16xf32>
    %c87 = arith.constant 87 : index
    %274 = memref.load %arg2[%c87] : memref<144xf32, #tpu.memory_space<smem>>
    %275 = vector.broadcast %274 : f32 to vector<16x16xf32>
    %276 = arith.mulf %275, %265 : vector<16x16xf32>
    %277 = arith.addf %260, %276 : vector<16x16xf32>
    %c123 = arith.constant 123 : index
    %278 = memref.load %arg2[%c123] : memref<144xf32, #tpu.memory_space<smem>>
    %279 = vector.broadcast %278 : f32 to vector<16x16xf32>
    %280 = arith.mulf %279, %265 : vector<16x16xf32>
    %281 = arith.addf %264, %280 : vector<16x16xf32>
    %282 = vector.extract_strided_slice %162 {offsets = [2, 1], sizes = [16, 16], strides = [1, 1]} : vector<18x18xf32> to vector<16x16xf32>
    %c16 = arith.constant 16 : index
    %283 = memref.load %arg2[%c16] : memref<144xf32, #tpu.memory_space<smem>>
    %284 = vector.broadcast %283 : f32 to vector<16x16xf32>
    %285 = arith.mulf %284, %282 : vector<16x16xf32>
    %286 = arith.addf %269, %285 : vector<16x16xf32>
    %c52 = arith.constant 52 : index
    %287 = memref.load %arg2[%c52] : memref<144xf32, #tpu.memory_space<smem>>
    %288 = vector.broadcast %287 : f32 to vector<16x16xf32>
    %289 = arith.mulf %288, %282 : vector<16x16xf32>
    %290 = arith.addf %273, %289 : vector<16x16xf32>
    %c88 = arith.constant 88 : index
    %291 = memref.load %arg2[%c88] : memref<144xf32, #tpu.memory_space<smem>>
    %292 = vector.broadcast %291 : f32 to vector<16x16xf32>
    %293 = arith.mulf %292, %282 : vector<16x16xf32>
    %294 = arith.addf %277, %293 : vector<16x16xf32>
    %c124 = arith.constant 124 : index
    %295 = memref.load %arg2[%c124] : memref<144xf32, #tpu.memory_space<smem>>
    %296 = vector.broadcast %295 : f32 to vector<16x16xf32>
    %297 = arith.mulf %296, %282 : vector<16x16xf32>
    %298 = arith.addf %281, %297 : vector<16x16xf32>
    %299 = vector.extract_strided_slice %162 {offsets = [2, 2], sizes = [16, 16], strides = [1, 1]} : vector<18x18xf32> to vector<16x16xf32>
    %c17 = arith.constant 17 : index
    %300 = memref.load %arg2[%c17] : memref<144xf32, #tpu.memory_space<smem>>
    %301 = vector.broadcast %300 : f32 to vector<16x16xf32>
    %302 = arith.mulf %301, %299 : vector<16x16xf32>
    %303 = arith.addf %286, %302 : vector<16x16xf32>
    %c53 = arith.constant 53 : index
    %304 = memref.load %arg2[%c53] : memref<144xf32, #tpu.memory_space<smem>>
    %305 = vector.broadcast %304 : f32 to vector<16x16xf32>
    %306 = arith.mulf %305, %299 : vector<16x16xf32>
    %307 = arith.addf %290, %306 : vector<16x16xf32>
    %c89 = arith.constant 89 : index
    %308 = memref.load %arg2[%c89] : memref<144xf32, #tpu.memory_space<smem>>
    %309 = vector.broadcast %308 : f32 to vector<16x16xf32>
    %310 = arith.mulf %309, %299 : vector<16x16xf32>
    %311 = arith.addf %294, %310 : vector<16x16xf32>
    %c125 = arith.constant 125 : index
    %312 = memref.load %arg2[%c125] : memref<144xf32, #tpu.memory_space<smem>>
    %313 = vector.broadcast %312 : f32 to vector<16x16xf32>
    %314 = arith.mulf %313, %299 : vector<16x16xf32>
    %315 = arith.addf %298, %314 : vector<16x16xf32>
    %c0_11 = arith.constant 0 : index
    %c2_12 = arith.constant 2 : index
    %c0_13 = arith.constant 0 : index
    %c0_14 = arith.constant 0 : index
    %316 = vector.load %arg1[%c0_11, %c2_12, %c0_13, %c0_14] : memref<1x4x18x18xbf16, #tpu.memory_space<vmem>>, vector<1x1x18x18xbf16>
    %317 = vector.shape_cast %316 : vector<1x1x18x18xbf16> to vector<18x18xbf16>
    %318 = arith.extf %317 : vector<18x18xbf16> to vector<18x18xf32>
    %319 = vector.extract_strided_slice %318 {offsets = [0, 0], sizes = [16, 16], strides = [1, 1]} : vector<18x18xf32> to vector<16x16xf32>
    %c18 = arith.constant 18 : index
    %320 = memref.load %arg2[%c18] : memref<144xf32, #tpu.memory_space<smem>>
    %321 = vector.broadcast %320 : f32 to vector<16x16xf32>
    %322 = arith.mulf %321, %319 : vector<16x16xf32>
    %323 = arith.addf %303, %322 : vector<16x16xf32>
    %c54 = arith.constant 54 : index
    %324 = memref.load %arg2[%c54] : memref<144xf32, #tpu.memory_space<smem>>
    %325 = vector.broadcast %324 : f32 to vector<16x16xf32>
    %326 = arith.mulf %325, %319 : vector<16x16xf32>
    %327 = arith.addf %307, %326 : vector<16x16xf32>
    %c90 = arith.constant 90 : index
    %328 = memref.load %arg2[%c90] : memref<144xf32, #tpu.memory_space<smem>>
    %329 = vector.broadcast %328 : f32 to vector<16x16xf32>
    %330 = arith.mulf %329, %319 : vector<16x16xf32>
    %331 = arith.addf %311, %330 : vector<16x16xf32>
    %c126 = arith.constant 126 : index
    %332 = memref.load %arg2[%c126] : memref<144xf32, #tpu.memory_space<smem>>
    %333 = vector.broadcast %332 : f32 to vector<16x16xf32>
    %334 = arith.mulf %333, %319 : vector<16x16xf32>
    %335 = arith.addf %315, %334 : vector<16x16xf32>
    %336 = vector.extract_strided_slice %318 {offsets = [0, 1], sizes = [16, 16], strides = [1, 1]} : vector<18x18xf32> to vector<16x16xf32>
    %c19 = arith.constant 19 : index
    %337 = memref.load %arg2[%c19] : memref<144xf32, #tpu.memory_space<smem>>
    %338 = vector.broadcast %337 : f32 to vector<16x16xf32>
    %339 = arith.mulf %338, %336 : vector<16x16xf32>
    %340 = arith.addf %323, %339 : vector<16x16xf32>
    %c55 = arith.constant 55 : index
    %341 = memref.load %arg2[%c55] : memref<144xf32, #tpu.memory_space<smem>>
    %342 = vector.broadcast %341 : f32 to vector<16x16xf32>
    %343 = arith.mulf %342, %336 : vector<16x16xf32>
    %344 = arith.addf %327, %343 : vector<16x16xf32>
    %c91 = arith.constant 91 : index
    %345 = memref.load %arg2[%c91] : memref<144xf32, #tpu.memory_space<smem>>
    %346 = vector.broadcast %345 : f32 to vector<16x16xf32>
    %347 = arith.mulf %346, %336 : vector<16x16xf32>
    %348 = arith.addf %331, %347 : vector<16x16xf32>
    %c127 = arith.constant 127 : index
    %349 = memref.load %arg2[%c127] : memref<144xf32, #tpu.memory_space<smem>>
    %350 = vector.broadcast %349 : f32 to vector<16x16xf32>
    %351 = arith.mulf %350, %336 : vector<16x16xf32>
    %352 = arith.addf %335, %351 : vector<16x16xf32>
    %353 = vector.extract_strided_slice %318 {offsets = [0, 2], sizes = [16, 16], strides = [1, 1]} : vector<18x18xf32> to vector<16x16xf32>
    %c20 = arith.constant 20 : index
    %354 = memref.load %arg2[%c20] : memref<144xf32, #tpu.memory_space<smem>>
    %355 = vector.broadcast %354 : f32 to vector<16x16xf32>
    %356 = arith.mulf %355, %353 : vector<16x16xf32>
    %357 = arith.addf %340, %356 : vector<16x16xf32>
    %c56 = arith.constant 56 : index
    %358 = memref.load %arg2[%c56] : memref<144xf32, #tpu.memory_space<smem>>
    %359 = vector.broadcast %358 : f32 to vector<16x16xf32>
    %360 = arith.mulf %359, %353 : vector<16x16xf32>
    %361 = arith.addf %344, %360 : vector<16x16xf32>
    %c92 = arith.constant 92 : index
    %362 = memref.load %arg2[%c92] : memref<144xf32, #tpu.memory_space<smem>>
    %363 = vector.broadcast %362 : f32 to vector<16x16xf32>
    %364 = arith.mulf %363, %353 : vector<16x16xf32>
    %365 = arith.addf %348, %364 : vector<16x16xf32>
    %c128 = arith.constant 128 : index
    %366 = memref.load %arg2[%c128] : memref<144xf32, #tpu.memory_space<smem>>
    %367 = vector.broadcast %366 : f32 to vector<16x16xf32>
    %368 = arith.mulf %367, %353 : vector<16x16xf32>
    %369 = arith.addf %352, %368 : vector<16x16xf32>
    %370 = vector.extract_strided_slice %318 {offsets = [1, 0], sizes = [16, 16], strides = [1, 1]} : vector<18x18xf32> to vector<16x16xf32>
    %c21 = arith.constant 21 : index
    %371 = memref.load %arg2[%c21] : memref<144xf32, #tpu.memory_space<smem>>
    %372 = vector.broadcast %371 : f32 to vector<16x16xf32>
    %373 = arith.mulf %372, %370 : vector<16x16xf32>
    %374 = arith.addf %357, %373 : vector<16x16xf32>
    %c57 = arith.constant 57 : index
    %375 = memref.load %arg2[%c57] : memref<144xf32, #tpu.memory_space<smem>>
    %376 = vector.broadcast %375 : f32 to vector<16x16xf32>
    %377 = arith.mulf %376, %370 : vector<16x16xf32>
    %378 = arith.addf %361, %377 : vector<16x16xf32>
    %c93 = arith.constant 93 : index
    %379 = memref.load %arg2[%c93] : memref<144xf32, #tpu.memory_space<smem>>
    %380 = vector.broadcast %379 : f32 to vector<16x16xf32>
    %381 = arith.mulf %380, %370 : vector<16x16xf32>
    %382 = arith.addf %365, %381 : vector<16x16xf32>
    %c129 = arith.constant 129 : index
    %383 = memref.load %arg2[%c129] : memref<144xf32, #tpu.memory_space<smem>>
    %384 = vector.broadcast %383 : f32 to vector<16x16xf32>
    %385 = arith.mulf %384, %370 : vector<16x16xf32>
    %386 = arith.addf %369, %385 : vector<16x16xf32>
    %387 = vector.extract_strided_slice %318 {offsets = [1, 1], sizes = [16, 16], strides = [1, 1]} : vector<18x18xf32> to vector<16x16xf32>
    %c22 = arith.constant 22 : index
    %388 = memref.load %arg2[%c22] : memref<144xf32, #tpu.memory_space<smem>>
    %389 = vector.broadcast %388 : f32 to vector<16x16xf32>
    %390 = arith.mulf %389, %387 : vector<16x16xf32>
    %391 = arith.addf %374, %390 : vector<16x16xf32>
    %c58 = arith.constant 58 : index
    %392 = memref.load %arg2[%c58] : memref<144xf32, #tpu.memory_space<smem>>
    %393 = vector.broadcast %392 : f32 to vector<16x16xf32>
    %394 = arith.mulf %393, %387 : vector<16x16xf32>
    %395 = arith.addf %378, %394 : vector<16x16xf32>
    %c94 = arith.constant 94 : index
    %396 = memref.load %arg2[%c94] : memref<144xf32, #tpu.memory_space<smem>>
    %397 = vector.broadcast %396 : f32 to vector<16x16xf32>
    %398 = arith.mulf %397, %387 : vector<16x16xf32>
    %399 = arith.addf %382, %398 : vector<16x16xf32>
    %c130 = arith.constant 130 : index
    %400 = memref.load %arg2[%c130] : memref<144xf32, #tpu.memory_space<smem>>
    %401 = vector.broadcast %400 : f32 to vector<16x16xf32>
    %402 = arith.mulf %401, %387 : vector<16x16xf32>
    %403 = arith.addf %386, %402 : vector<16x16xf32>
    %404 = vector.extract_strided_slice %318 {offsets = [1, 2], sizes = [16, 16], strides = [1, 1]} : vector<18x18xf32> to vector<16x16xf32>
    %c23 = arith.constant 23 : index
    %405 = memref.load %arg2[%c23] : memref<144xf32, #tpu.memory_space<smem>>
    %406 = vector.broadcast %405 : f32 to vector<16x16xf32>
    %407 = arith.mulf %406, %404 : vector<16x16xf32>
    %408 = arith.addf %391, %407 : vector<16x16xf32>
    %c59 = arith.constant 59 : index
    %409 = memref.load %arg2[%c59] : memref<144xf32, #tpu.memory_space<smem>>
    %410 = vector.broadcast %409 : f32 to vector<16x16xf32>
    %411 = arith.mulf %410, %404 : vector<16x16xf32>
    %412 = arith.addf %395, %411 : vector<16x16xf32>
    %c95 = arith.constant 95 : index
    %413 = memref.load %arg2[%c95] : memref<144xf32, #tpu.memory_space<smem>>
    %414 = vector.broadcast %413 : f32 to vector<16x16xf32>
    %415 = arith.mulf %414, %404 : vector<16x16xf32>
    %416 = arith.addf %399, %415 : vector<16x16xf32>
    %c131 = arith.constant 131 : index
    %417 = memref.load %arg2[%c131] : memref<144xf32, #tpu.memory_space<smem>>
    %418 = vector.broadcast %417 : f32 to vector<16x16xf32>
    %419 = arith.mulf %418, %404 : vector<16x16xf32>
    %420 = arith.addf %403, %419 : vector<16x16xf32>
    %421 = vector.extract_strided_slice %318 {offsets = [2, 0], sizes = [16, 16], strides = [1, 1]} : vector<18x18xf32> to vector<16x16xf32>
    %c24 = arith.constant 24 : index
    %422 = memref.load %arg2[%c24] : memref<144xf32, #tpu.memory_space<smem>>
    %423 = vector.broadcast %422 : f32 to vector<16x16xf32>
    %424 = arith.mulf %423, %421 : vector<16x16xf32>
    %425 = arith.addf %408, %424 : vector<16x16xf32>
    %c60 = arith.constant 60 : index
    %426 = memref.load %arg2[%c60] : memref<144xf32, #tpu.memory_space<smem>>
    %427 = vector.broadcast %426 : f32 to vector<16x16xf32>
    %428 = arith.mulf %427, %421 : vector<16x16xf32>
    %429 = arith.addf %412, %428 : vector<16x16xf32>
    %c96 = arith.constant 96 : index
    %430 = memref.load %arg2[%c96] : memref<144xf32, #tpu.memory_space<smem>>
    %431 = vector.broadcast %430 : f32 to vector<16x16xf32>
    %432 = arith.mulf %431, %421 : vector<16x16xf32>
    %433 = arith.addf %416, %432 : vector<16x16xf32>
    %c132 = arith.constant 132 : index
    %434 = memref.load %arg2[%c132] : memref<144xf32, #tpu.memory_space<smem>>
    %435 = vector.broadcast %434 : f32 to vector<16x16xf32>
    %436 = arith.mulf %435, %421 : vector<16x16xf32>
    %437 = arith.addf %420, %436 : vector<16x16xf32>
    %438 = vector.extract_strided_slice %318 {offsets = [2, 1], sizes = [16, 16], strides = [1, 1]} : vector<18x18xf32> to vector<16x16xf32>
    %c25 = arith.constant 25 : index
    %439 = memref.load %arg2[%c25] : memref<144xf32, #tpu.memory_space<smem>>
    %440 = vector.broadcast %439 : f32 to vector<16x16xf32>
    %441 = arith.mulf %440, %438 : vector<16x16xf32>
    %442 = arith.addf %425, %441 : vector<16x16xf32>
    %c61 = arith.constant 61 : index
    %443 = memref.load %arg2[%c61] : memref<144xf32, #tpu.memory_space<smem>>
    %444 = vector.broadcast %443 : f32 to vector<16x16xf32>
    %445 = arith.mulf %444, %438 : vector<16x16xf32>
    %446 = arith.addf %429, %445 : vector<16x16xf32>
    %c97 = arith.constant 97 : index
    %447 = memref.load %arg2[%c97] : memref<144xf32, #tpu.memory_space<smem>>
    %448 = vector.broadcast %447 : f32 to vector<16x16xf32>
    %449 = arith.mulf %448, %438 : vector<16x16xf32>
    %450 = arith.addf %433, %449 : vector<16x16xf32>
    %c133 = arith.constant 133 : index
    %451 = memref.load %arg2[%c133] : memref<144xf32, #tpu.memory_space<smem>>
    %452 = vector.broadcast %451 : f32 to vector<16x16xf32>
    %453 = arith.mulf %452, %438 : vector<16x16xf32>
    %454 = arith.addf %437, %453 : vector<16x16xf32>
    %455 = vector.extract_strided_slice %318 {offsets = [2, 2], sizes = [16, 16], strides = [1, 1]} : vector<18x18xf32> to vector<16x16xf32>
    %c26 = arith.constant 26 : index
    %456 = memref.load %arg2[%c26] : memref<144xf32, #tpu.memory_space<smem>>
    %457 = vector.broadcast %456 : f32 to vector<16x16xf32>
    %458 = arith.mulf %457, %455 : vector<16x16xf32>
    %459 = arith.addf %442, %458 : vector<16x16xf32>
    %c62 = arith.constant 62 : index
    %460 = memref.load %arg2[%c62] : memref<144xf32, #tpu.memory_space<smem>>
    %461 = vector.broadcast %460 : f32 to vector<16x16xf32>
    %462 = arith.mulf %461, %455 : vector<16x16xf32>
    %463 = arith.addf %446, %462 : vector<16x16xf32>
    %c98 = arith.constant 98 : index
    %464 = memref.load %arg2[%c98] : memref<144xf32, #tpu.memory_space<smem>>
    %465 = vector.broadcast %464 : f32 to vector<16x16xf32>
    %466 = arith.mulf %465, %455 : vector<16x16xf32>
    %467 = arith.addf %450, %466 : vector<16x16xf32>
    %c134 = arith.constant 134 : index
    %468 = memref.load %arg2[%c134] : memref<144xf32, #tpu.memory_space<smem>>
    %469 = vector.broadcast %468 : f32 to vector<16x16xf32>
    %470 = arith.mulf %469, %455 : vector<16x16xf32>
    %471 = arith.addf %454, %470 : vector<16x16xf32>
    %c0_15 = arith.constant 0 : index
    %c3_16 = arith.constant 3 : index
    %c0_17 = arith.constant 0 : index
    %c0_18 = arith.constant 0 : index
    %472 = vector.load %arg1[%c0_15, %c3_16, %c0_17, %c0_18] : memref<1x4x18x18xbf16, #tpu.memory_space<vmem>>, vector<1x1x18x18xbf16>
    %473 = vector.shape_cast %472 : vector<1x1x18x18xbf16> to vector<18x18xbf16>
    %474 = arith.extf %473 : vector<18x18xbf16> to vector<18x18xf32>
    %475 = vector.extract_strided_slice %474 {offsets = [0, 0], sizes = [16, 16], strides = [1, 1]} : vector<18x18xf32> to vector<16x16xf32>
    %c27 = arith.constant 27 : index
    %476 = memref.load %arg2[%c27] : memref<144xf32, #tpu.memory_space<smem>>
    %477 = vector.broadcast %476 : f32 to vector<16x16xf32>
    %478 = arith.mulf %477, %475 : vector<16x16xf32>
    %479 = arith.addf %459, %478 : vector<16x16xf32>
    %c63 = arith.constant 63 : index
    %480 = memref.load %arg2[%c63] : memref<144xf32, #tpu.memory_space<smem>>
    %481 = vector.broadcast %480 : f32 to vector<16x16xf32>
    %482 = arith.mulf %481, %475 : vector<16x16xf32>
    %483 = arith.addf %463, %482 : vector<16x16xf32>
    %c99 = arith.constant 99 : index
    %484 = memref.load %arg2[%c99] : memref<144xf32, #tpu.memory_space<smem>>
    %485 = vector.broadcast %484 : f32 to vector<16x16xf32>
    %486 = arith.mulf %485, %475 : vector<16x16xf32>
    %487 = arith.addf %467, %486 : vector<16x16xf32>
    %c135 = arith.constant 135 : index
    %488 = memref.load %arg2[%c135] : memref<144xf32, #tpu.memory_space<smem>>
    %489 = vector.broadcast %488 : f32 to vector<16x16xf32>
    %490 = arith.mulf %489, %475 : vector<16x16xf32>
    %491 = arith.addf %471, %490 : vector<16x16xf32>
    %492 = vector.extract_strided_slice %474 {offsets = [0, 1], sizes = [16, 16], strides = [1, 1]} : vector<18x18xf32> to vector<16x16xf32>
    %c28 = arith.constant 28 : index
    %493 = memref.load %arg2[%c28] : memref<144xf32, #tpu.memory_space<smem>>
    %494 = vector.broadcast %493 : f32 to vector<16x16xf32>
    %495 = arith.mulf %494, %492 : vector<16x16xf32>
    %496 = arith.addf %479, %495 : vector<16x16xf32>
    %c64 = arith.constant 64 : index
    %497 = memref.load %arg2[%c64] : memref<144xf32, #tpu.memory_space<smem>>
    %498 = vector.broadcast %497 : f32 to vector<16x16xf32>
    %499 = arith.mulf %498, %492 : vector<16x16xf32>
    %500 = arith.addf %483, %499 : vector<16x16xf32>
    %c100 = arith.constant 100 : index
    %501 = memref.load %arg2[%c100] : memref<144xf32, #tpu.memory_space<smem>>
    %502 = vector.broadcast %501 : f32 to vector<16x16xf32>
    %503 = arith.mulf %502, %492 : vector<16x16xf32>
    %504 = arith.addf %487, %503 : vector<16x16xf32>
    %c136 = arith.constant 136 : index
    %505 = memref.load %arg2[%c136] : memref<144xf32, #tpu.memory_space<smem>>
    %506 = vector.broadcast %505 : f32 to vector<16x16xf32>
    %507 = arith.mulf %506, %492 : vector<16x16xf32>
    %508 = arith.addf %491, %507 : vector<16x16xf32>
    %509 = vector.extract_strided_slice %474 {offsets = [0, 2], sizes = [16, 16], strides = [1, 1]} : vector<18x18xf32> to vector<16x16xf32>
    %c29 = arith.constant 29 : index
    %510 = memref.load %arg2[%c29] : memref<144xf32, #tpu.memory_space<smem>>
    %511 = vector.broadcast %510 : f32 to vector<16x16xf32>
    %512 = arith.mulf %511, %509 : vector<16x16xf32>
    %513 = arith.addf %496, %512 : vector<16x16xf32>
    %c65 = arith.constant 65 : index
    %514 = memref.load %arg2[%c65] : memref<144xf32, #tpu.memory_space<smem>>
    %515 = vector.broadcast %514 : f32 to vector<16x16xf32>
    %516 = arith.mulf %515, %509 : vector<16x16xf32>
    %517 = arith.addf %500, %516 : vector<16x16xf32>
    %c101 = arith.constant 101 : index
    %518 = memref.load %arg2[%c101] : memref<144xf32, #tpu.memory_space<smem>>
    %519 = vector.broadcast %518 : f32 to vector<16x16xf32>
    %520 = arith.mulf %519, %509 : vector<16x16xf32>
    %521 = arith.addf %504, %520 : vector<16x16xf32>
    %c137 = arith.constant 137 : index
    %522 = memref.load %arg2[%c137] : memref<144xf32, #tpu.memory_space<smem>>
    %523 = vector.broadcast %522 : f32 to vector<16x16xf32>
    %524 = arith.mulf %523, %509 : vector<16x16xf32>
    %525 = arith.addf %508, %524 : vector<16x16xf32>
    %526 = vector.extract_strided_slice %474 {offsets = [1, 0], sizes = [16, 16], strides = [1, 1]} : vector<18x18xf32> to vector<16x16xf32>
    %c30 = arith.constant 30 : index
    %527 = memref.load %arg2[%c30] : memref<144xf32, #tpu.memory_space<smem>>
    %528 = vector.broadcast %527 : f32 to vector<16x16xf32>
    %529 = arith.mulf %528, %526 : vector<16x16xf32>
    %530 = arith.addf %513, %529 : vector<16x16xf32>
    %c66 = arith.constant 66 : index
    %531 = memref.load %arg2[%c66] : memref<144xf32, #tpu.memory_space<smem>>
    %532 = vector.broadcast %531 : f32 to vector<16x16xf32>
    %533 = arith.mulf %532, %526 : vector<16x16xf32>
    %534 = arith.addf %517, %533 : vector<16x16xf32>
    %c102 = arith.constant 102 : index
    %535 = memref.load %arg2[%c102] : memref<144xf32, #tpu.memory_space<smem>>
    %536 = vector.broadcast %535 : f32 to vector<16x16xf32>
    %537 = arith.mulf %536, %526 : vector<16x16xf32>
    %538 = arith.addf %521, %537 : vector<16x16xf32>
    %c138 = arith.constant 138 : index
    %539 = memref.load %arg2[%c138] : memref<144xf32, #tpu.memory_space<smem>>
    %540 = vector.broadcast %539 : f32 to vector<16x16xf32>
    %541 = arith.mulf %540, %526 : vector<16x16xf32>
    %542 = arith.addf %525, %541 : vector<16x16xf32>
    %543 = vector.extract_strided_slice %474 {offsets = [1, 1], sizes = [16, 16], strides = [1, 1]} : vector<18x18xf32> to vector<16x16xf32>
    %c31 = arith.constant 31 : index
    %544 = memref.load %arg2[%c31] : memref<144xf32, #tpu.memory_space<smem>>
    %545 = vector.broadcast %544 : f32 to vector<16x16xf32>
    %546 = arith.mulf %545, %543 : vector<16x16xf32>
    %547 = arith.addf %530, %546 : vector<16x16xf32>
    %c67 = arith.constant 67 : index
    %548 = memref.load %arg2[%c67] : memref<144xf32, #tpu.memory_space<smem>>
    %549 = vector.broadcast %548 : f32 to vector<16x16xf32>
    %550 = arith.mulf %549, %543 : vector<16x16xf32>
    %551 = arith.addf %534, %550 : vector<16x16xf32>
    %c103 = arith.constant 103 : index
    %552 = memref.load %arg2[%c103] : memref<144xf32, #tpu.memory_space<smem>>
    %553 = vector.broadcast %552 : f32 to vector<16x16xf32>
    %554 = arith.mulf %553, %543 : vector<16x16xf32>
    %555 = arith.addf %538, %554 : vector<16x16xf32>
    %c139 = arith.constant 139 : index
    %556 = memref.load %arg2[%c139] : memref<144xf32, #tpu.memory_space<smem>>
    %557 = vector.broadcast %556 : f32 to vector<16x16xf32>
    %558 = arith.mulf %557, %543 : vector<16x16xf32>
    %559 = arith.addf %542, %558 : vector<16x16xf32>
    %560 = vector.extract_strided_slice %474 {offsets = [1, 2], sizes = [16, 16], strides = [1, 1]} : vector<18x18xf32> to vector<16x16xf32>
    %c32 = arith.constant 32 : index
    %561 = memref.load %arg2[%c32] : memref<144xf32, #tpu.memory_space<smem>>
    %562 = vector.broadcast %561 : f32 to vector<16x16xf32>
    %563 = arith.mulf %562, %560 : vector<16x16xf32>
    %564 = arith.addf %547, %563 : vector<16x16xf32>
    %c68 = arith.constant 68 : index
    %565 = memref.load %arg2[%c68] : memref<144xf32, #tpu.memory_space<smem>>
    %566 = vector.broadcast %565 : f32 to vector<16x16xf32>
    %567 = arith.mulf %566, %560 : vector<16x16xf32>
    %568 = arith.addf %551, %567 : vector<16x16xf32>
    %c104 = arith.constant 104 : index
    %569 = memref.load %arg2[%c104] : memref<144xf32, #tpu.memory_space<smem>>
    %570 = vector.broadcast %569 : f32 to vector<16x16xf32>
    %571 = arith.mulf %570, %560 : vector<16x16xf32>
    %572 = arith.addf %555, %571 : vector<16x16xf32>
    %c140 = arith.constant 140 : index
    %573 = memref.load %arg2[%c140] : memref<144xf32, #tpu.memory_space<smem>>
    %574 = vector.broadcast %573 : f32 to vector<16x16xf32>
    %575 = arith.mulf %574, %560 : vector<16x16xf32>
    %576 = arith.addf %559, %575 : vector<16x16xf32>
    %577 = vector.extract_strided_slice %474 {offsets = [2, 0], sizes = [16, 16], strides = [1, 1]} : vector<18x18xf32> to vector<16x16xf32>
    %c33 = arith.constant 33 : index
    %578 = memref.load %arg2[%c33] : memref<144xf32, #tpu.memory_space<smem>>
    %579 = vector.broadcast %578 : f32 to vector<16x16xf32>
    %580 = arith.mulf %579, %577 : vector<16x16xf32>
    %581 = arith.addf %564, %580 : vector<16x16xf32>
    %c69 = arith.constant 69 : index
    %582 = memref.load %arg2[%c69] : memref<144xf32, #tpu.memory_space<smem>>
    %583 = vector.broadcast %582 : f32 to vector<16x16xf32>
    %584 = arith.mulf %583, %577 : vector<16x16xf32>
    %585 = arith.addf %568, %584 : vector<16x16xf32>
    %c105 = arith.constant 105 : index
    %586 = memref.load %arg2[%c105] : memref<144xf32, #tpu.memory_space<smem>>
    %587 = vector.broadcast %586 : f32 to vector<16x16xf32>
    %588 = arith.mulf %587, %577 : vector<16x16xf32>
    %589 = arith.addf %572, %588 : vector<16x16xf32>
    %c141 = arith.constant 141 : index
    %590 = memref.load %arg2[%c141] : memref<144xf32, #tpu.memory_space<smem>>
    %591 = vector.broadcast %590 : f32 to vector<16x16xf32>
    %592 = arith.mulf %591, %577 : vector<16x16xf32>
    %593 = arith.addf %576, %592 : vector<16x16xf32>
    %594 = vector.extract_strided_slice %474 {offsets = [2, 1], sizes = [16, 16], strides = [1, 1]} : vector<18x18xf32> to vector<16x16xf32>
    %c34 = arith.constant 34 : index
    %595 = memref.load %arg2[%c34] : memref<144xf32, #tpu.memory_space<smem>>
    %596 = vector.broadcast %595 : f32 to vector<16x16xf32>
    %597 = arith.mulf %596, %594 : vector<16x16xf32>
    %598 = arith.addf %581, %597 : vector<16x16xf32>
    %c70 = arith.constant 70 : index
    %599 = memref.load %arg2[%c70] : memref<144xf32, #tpu.memory_space<smem>>
    %600 = vector.broadcast %599 : f32 to vector<16x16xf32>
    %601 = arith.mulf %600, %594 : vector<16x16xf32>
    %602 = arith.addf %585, %601 : vector<16x16xf32>
    %c106 = arith.constant 106 : index
    %603 = memref.load %arg2[%c106] : memref<144xf32, #tpu.memory_space<smem>>
    %604 = vector.broadcast %603 : f32 to vector<16x16xf32>
    %605 = arith.mulf %604, %594 : vector<16x16xf32>
    %606 = arith.addf %589, %605 : vector<16x16xf32>
    %c142 = arith.constant 142 : index
    %607 = memref.load %arg2[%c142] : memref<144xf32, #tpu.memory_space<smem>>
    %608 = vector.broadcast %607 : f32 to vector<16x16xf32>
    %609 = arith.mulf %608, %594 : vector<16x16xf32>
    %610 = arith.addf %593, %609 : vector<16x16xf32>
    %611 = vector.extract_strided_slice %474 {offsets = [2, 2], sizes = [16, 16], strides = [1, 1]} : vector<18x18xf32> to vector<16x16xf32>
    %c35 = arith.constant 35 : index
    %612 = memref.load %arg2[%c35] : memref<144xf32, #tpu.memory_space<smem>>
    %613 = vector.broadcast %612 : f32 to vector<16x16xf32>
    %614 = arith.mulf %613, %611 : vector<16x16xf32>
    %615 = arith.addf %598, %614 : vector<16x16xf32>
    %c71 = arith.constant 71 : index
    %616 = memref.load %arg2[%c71] : memref<144xf32, #tpu.memory_space<smem>>
    %617 = vector.broadcast %616 : f32 to vector<16x16xf32>
    %618 = arith.mulf %617, %611 : vector<16x16xf32>
    %619 = arith.addf %602, %618 : vector<16x16xf32>
    %c107 = arith.constant 107 : index
    %620 = memref.load %arg2[%c107] : memref<144xf32, #tpu.memory_space<smem>>
    %621 = vector.broadcast %620 : f32 to vector<16x16xf32>
    %622 = arith.mulf %621, %611 : vector<16x16xf32>
    %623 = arith.addf %606, %622 : vector<16x16xf32>
    %c143 = arith.constant 143 : index
    %624 = memref.load %arg2[%c143] : memref<144xf32, #tpu.memory_space<smem>>
    %625 = vector.broadcast %624 : f32 to vector<16x16xf32>
    %626 = arith.mulf %625, %611 : vector<16x16xf32>
    %627 = arith.addf %610, %626 : vector<16x16xf32>
    %c0_19 = arith.constant 0 : index
    %628 = memref.load %arg3[%c0_19] : memref<4xf32, #tpu.memory_space<smem>>
    %629 = vector.broadcast %628 : f32 to vector<16x16xf32>
    %630 = arith.addf %615, %629 : vector<16x16xf32>
    %cst_20 = arith.constant 0.000000e+00 : f32
    %631 = vector.broadcast %cst_20 : f32 to vector<16x16xf32>
    %632 = arith.maximumf %630, %631 : vector<16x16xf32>
    %c0_21 = arith.constant 0 : index
    %c0_22 = arith.constant 0 : index
    %c0_23 = arith.constant 0 : index
    %c0_24 = arith.constant 0 : index
    %633 = vector.load %arg4[%c0_21, %c0_22, %c0_23, %c0_24] : memref<1x4x16x16xf32, #tpu.memory_space<vmem>>, vector<1x1x16x16xf32>
    %634 = vector.shape_cast %633 : vector<1x1x16x16xf32> to vector<16x16xf32>
    %635 = vector.shape_cast %632 : vector<16x16xf32> to vector<1x1x16x16xf32>
    tpu.vector_store %arg4[%c0_21, %c0_22, %c0_23, %c0_24], %635 {strides = array<i32>} : memref<1x4x16x16xf32, #tpu.memory_space<vmem>>, vector<1x1x16x16xf32>,
    %c1_25 = arith.constant 1 : index
    %636 = memref.load %arg3[%c1_25] : memref<4xf32, #tpu.memory_space<smem>>
    %637 = vector.broadcast %636 : f32 to vector<16x16xf32>
    %638 = arith.addf %619, %637 : vector<16x16xf32>
    %cst_26 = arith.constant 0.000000e+00 : f32
    %639 = vector.broadcast %cst_26 : f32 to vector<16x16xf32>
    %640 = arith.maximumf %638, %639 : vector<16x16xf32>
    %c0_27 = arith.constant 0 : index
    %c1_28 = arith.constant 1 : index
    %c0_29 = arith.constant 0 : index
    %c0_30 = arith.constant 0 : index
    %641 = vector.load %arg4[%c0_27, %c1_28, %c0_29, %c0_30] : memref<1x4x16x16xf32, #tpu.memory_space<vmem>>, vector<1x1x16x16xf32>
    %642 = vector.shape_cast %641 : vector<1x1x16x16xf32> to vector<16x16xf32>
    %643 = vector.shape_cast %640 : vector<16x16xf32> to vector<1x1x16x16xf32>
    tpu.vector_store %arg4[%c0_27, %c1_28, %c0_29, %c0_30], %643 {strides = array<i32>} : memref<1x4x16x16xf32, #tpu.memory_space<vmem>>, vector<1x1x16x16xf32>,
    %c2_31 = arith.constant 2 : index
    %644 = memref.load %arg3[%c2_31] : memref<4xf32, #tpu.memory_space<smem>>
    %645 = vector.broadcast %644 : f32 to vector<16x16xf32>
    %646 = arith.addf %623, %645 : vector<16x16xf32>
    %cst_32 = arith.constant 0.000000e+00 : f32
    %647 = vector.broadcast %cst_32 : f32 to vector<16x16xf32>
    %648 = arith.maximumf %646, %647 : vector<16x16xf32>
    %c0_33 = arith.constant 0 : index
    %c2_34 = arith.constant 2 : index
    %c0_35 = arith.constant 0 : index
    %c0_36 = arith.constant 0 : index
    %649 = vector.load %arg4[%c0_33, %c2_34, %c0_35, %c0_36] : memref<1x4x16x16xf32, #tpu.memory_space<vmem>>, vector<1x1x16x16xf32>
    %650 = vector.shape_cast %649 : vector<1x1x16x16xf32> to vector<16x16xf32>
    %651 = vector.shape_cast %648 : vector<16x16xf32> to vector<1x1x16x16xf32>
    tpu.vector_store %arg4[%c0_33, %c2_34, %c0_35, %c0_36], %651 {strides = array<i32>} : memref<1x4x16x16xf32, #tpu.memory_space<vmem>>, vector<1x1x16x16xf32>,
    %c3_37 = arith.constant 3 : index
    %652 = memref.load %arg3[%c3_37] : memref<4xf32, #tpu.memory_space<smem>>
    %653 = vector.broadcast %652 : f32 to vector<16x16xf32>
    %654 = arith.addf %627, %653 : vector<16x16xf32>
    %cst_38 = arith.constant 0.000000e+00 : f32
    %655 = vector.broadcast %cst_38 : f32 to vector<16x16xf32>
    %656 = arith.maximumf %654, %655 : vector<16x16xf32>
    %c0_39 = arith.constant 0 : index
    %c3_40 = arith.constant 3 : index
    %c0_41 = arith.constant 0 : index
    %c0_42 = arith.constant 0 : index
    %657 = vector.load %arg4[%c0_39, %c3_40, %c0_41, %c0_42] : memref<1x4x16x16xf32, #tpu.memory_space<vmem>>, vector<1x1x16x16xf32>
    %658 = vector.shape_cast %657 : vector<1x1x16x16xf32> to vector<16x16xf32>
    %659 = vector.shape_cast %656 : vector<16x16xf32> to vector<1x1x16x16xf32>
    tpu.vector_store %arg4[%c0_39, %c3_40, %c0_41, %c0_42], %659 {strides = array<i32>} : memref<1x4x16x16xf32, #tpu.memory_space<vmem>>, vector<1x1x16x16xf32>,
    return
  }
  func.func @transform_0(%arg0: i32) -> (i32, i32, i32, i32) {
    %c0_i32 = arith.constant 0 : i32
    %c0_i32_0 = arith.constant 0 : i32
    %c0_i32_1 = arith.constant 0 : i32
    %c0_i32_2 = arith.constant 0 : i32
    return %arg0, %c0_i32, %c0_i32_0, %c0_i32_1 : i32, i32, i32, i32
  }
  func.func @transform_1(%arg0: i32) -> i32 {
    %c0_i32 = arith.constant 0 : i32
    %c0_i32_0 = arith.constant 0 : i32
    return %c0_i32 : i32
  }
  func.func @transform_2(%arg0: i32) -> i32 {
    %c0_i32 = arith.constant 0 : i32
    %c0_i32_0 = arith.constant 0 : i32
    return %c0_i32 : i32
  }
  func.func @transform_3(%arg0: i32) -> (i32, i32, i32, i32) {
    %c0_i32 = arith.constant 0 : i32
    %c0_i32_0 = arith.constant 0 : i32
    %c0_i32_1 = arith.constant 0 : i32
    %c0_i32_2 = arith.constant 0 : i32
    return %arg0, %c0_i32, %c0_i32_0, %c0_i32_1 : i32, i32, i32, i32
  }
}

</mosaic_0001>

<llo_original>
// kernel: tpu_custom_call.1
$region0: #{tpu_custom_call.1}
  #allocation0 [shape = 'u32[]', space=smem, size = 0x4, offset = 0x4, fixed_abs, tag = 'smem constant byte address 0x4 - core index']
  #allocation1 [shape = 'u32[144,128]{1,0:T(1,128)}', space=vmem, size = 0x12000, scoped, tag = 'internal scratch']
  %s0 = inlined_call_operand.vmem [shape: bf16[2,4,18,18], index: 0, kind: input, shape index: {}]
  %s1 = inlined_call_operand.vmem [shape: f32[144], index: 1, kind: input, shape index: {}]
  %s2 = inlined_call_operand.vmem [shape: f32[4], index: 2, kind: input, shape index: {}]
  %s3 = inlined_call_operand.hbm [shape: f32[2,4,16,16], index: 3, kind: output, shape index: {}]
  %s4 = sld [smem:[#allocation0]]
  $region53: #{tpu_custom_call.1} parent=0
    _
  %s6 = ssub.s32 1, %s4
  %s7 = scalar_select 0, %s6, %s4
  $region1: #{tpu_custom_call.1} parent=0
    #allocation2 [shape = 'u8[1024]{0}', space=smem, size = 0x400, scoped, tag = 'input window, operand 1, single buffered']
    #allocation3 [shape = 's32[2]{0}', space=sflag, size = 0x8, scoped, tag = 'scoped memory for tpu_custom_call.1']
    #allocation4 [shape = 's32[2]{0}', space=sflag, size = 0x8, scoped, tag = 'scoped memory for tpu_custom_call.1']
    #allocation5 [shape = 'u8[512]{0}', space=smem, size = 0x200, scoped, tag = 'input window, operand 2, single buffered']
    #allocation6 [shape = 's32[1]{0}', space=sflag, size = 0x4, scoped, tag = 'scoped memory for tpu_custom_call.1']
    #allocation7 [shape = 'u8[65536]{0}', space=vmem, size = 0x10000, scoped, tag = 'output window, operand 0']
    %8 = vsyncpa [#allocation4], 0
    %9 = vsyncpa [#allocation6], 0
    %10 = vsyncpa [#allocation3], 0
    %s11 = scalar_lea.sflag [#allocation3], 1
    %12 = vsyncpa %s11, 0
    loop: start=0, step=1, limit=4
    $region2: #{tpu_custom_call.1} parent=1 // loop_pre_header
      _
    $region3: #{tpu_custom_call.1} parent=1 // loop_header
      %s14 = sphi 0, %s18
      %p15 = scmp.ge.s32.totalorder %s14, 4
      %s24 = sphi 0, %s26
      %s27 = sphi 0, %s24
      %s28 = sphi 0, %s27
      %s44 = sphi 0, %s28
      %s48 = sphi 0, %s48
      %s50 = sphi 0, %s48
      %s51 = sphi 0, %s50
      %s65 = sphi 0, %s51
      %s69 = sphi 0, %s69
      %s71 = sphi 0, %s69
      %s72 = sphi 0, %s71
      %s86 = sphi 0, %s72
      %s92 = sphi 0, %s94
      %s95 = sphi 0, %s92
      %s96 = sphi 0, %s95
      %s112 = sphi 0, %s96
    $region4: #{tpu_custom_call.1} parent=1 // loop_header_branch
      %17 = sbr.rel (%p15) target = $region8
    $region5: #{tpu_custom_call.1} parent=1 // loop_body
      %s19 = ssub.s32 %s14, 1
      %s20 = ssub.s32 %s14, 2
      %s21 = sadd.s32 %s14, 1
      %s22 = ssub.s32 %s14, %s21
      %p23 = scmp.eq.s32.totalorder %s22, 0
      %s25 = sadd.s32 %s24, 1
      %s26 = scalar_select %p23, %s24, %s25
      %p29 = pneg %p23
      %p30 = scmp.eq.s32.totalorder %s14, 1
      %p31 = por %p29, %p30
      %p32 = scmp.ne.s32.totalorder %s24, %s27
      %p33 = scmp.eq.s32.totalorder %s14, 0
      %p34 = por %p32, %p33
      %p35 = scmp.ne.s32.totalorder %s24, %s27
      %p36 = scmp.eq.s32.totalorder %s19, 1
      %p37 = por %p35, %p36
      %p38 = scmp.ne.s32.totalorder %s27, %s28
      %p39 = scmp.eq.s32.totalorder %s19, 0
      %p40 = por %p38, %p39
      %p41 = scmp.ne.s32.totalorder %s27, %s28
      %p42 = scmp.eq.s32.totalorder %s20, 1
      %p43 = por %p41, %p42
      %p45 = scmp.ne.s32.totalorder %s28, %s44
      %p46 = scmp.eq.s32.totalorder %s20, 0
      %p47 = por %p45, %p46
      %s49 = sadd.s32 %s48, 1
      %p52 = scmp.eq.s32.totalorder %s14, 1
      %p53 = scmp.ne.s32.totalorder %s48, %s50
      %p54 = scmp.eq.s32.totalorder %s14, 0
      %p55 = por %p53, %p54
      %p56 = scmp.ne.s32.totalorder %s48, %s50
      %p57 = scmp.eq.s32.totalorder %s19, 1
      %p58 = por %p56, %p57
      %p59 = scmp.ne.s32.totalorder %s50, %s51
      %p60 = scmp.eq.s32.totalorder %s19, 0
      %p61 = por %p59, %p60
      %p62 = scmp.ne.s32.totalorder %s50, %s51
      %p63 = scmp.eq.s32.totalorder %s20, 1
      %p64 = por %p62, %p63
      %p66 = scmp.ne.s32.totalorder %s51, %s65
      %p67 = scmp.eq.s32.totalorder %s20, 0
      %p68 = por %p66, %p67
      %s70 = sadd.s32 %s69, 1
      %p73 = scmp.eq.s32.totalorder %s14, 1
      %p74 = scmp.ne.s32.totalorder %s69, %s71
      %p75 = scmp.eq.s32.totalorder %s14, 0
      %p76 = por %p74, %p75
      %p77 = scmp.ne.s32.totalorder %s69, %s71
      %p78 = scmp.eq.s32.totalorder %s19, 1
      %p79 = por %p77, %p78
      %p80 = scmp.ne.s32.totalorder %s71, %s72
      %p81 = scmp.eq.s32.totalorder %s19, 0
      %p82 = por %p80, %p81
      %p83 = scmp.ne.s32.totalorder %s71, %s72
      %p84 = scmp.eq.s32.totalorder %s20, 1
      %p85 = por %p83, %p84
      %p87 = scmp.ne.s32.totalorder %s72, %s86
      %p88 = scmp.eq.s32.totalorder %s20, 0
      %p89 = por %p87, %p88
      %s90 = ssub.s32 %s14, %s21
      %p91 = scmp.eq.s32.totalorder %s90, 0
      %s93 = sadd.s32 %s92, 1
      %s94 = scalar_select %p91, %s92, %s93
      %p97 = pneg %p91
      %p98 = scmp.eq.s32.totalorder %s14, 1
      %p99 = por %p97, %p98
      %p100 = scmp.ne.s32.totalorder %s92, %s95
      %p101 = scmp.eq.s32.totalorder %s14, 0
      %p102 = por %p100, %p101
      %p103 = scmp.ne.s32.totalorder %s92, %s95
      %p104 = scmp.eq.s32.totalorder %s19, 1
      %p105 = por %p103, %p104
      %p106 = scmp.ne.s32.totalorder %s95, %s96
      %p107 = scmp.eq.s32.totalorder %s19, 0
      %p108 = por %p106, %p107
      %p109 = scmp.ne.s32.totalorder %s95, %s96
      %p110 = scmp.eq.s32.totalorder %s20, 1
      %p111 = por %p109, %p110
      %p113 = scmp.ne.s32.totalorder %s96, %s112
      %p114 = scmp.eq.s32.totalorder %s20, 0
      %p115 = por %p113, %p114
      %p116 = scmp.le.s32.totalorder 1, %s14
      %p117 = scmp.lt.s32.totalorder %s14, 3
      %p118 = pnand %p116, %p117
      %p119 = pneg %p118
      // Predicated region
      $region9: #{tpu_custom_call.1} parent=5 // pred_check
        _
      $region10: #{tpu_custom_call.1} parent=5 // pred_check_branch
        %121 = sbr.rel (%p118) target = $region12
      $region11: #{tpu_custom_call.1} parent=5 // pred_region
        %s122 = ssub.s32 %s14, 1
        // Predicated region
        $region13: #{tpu_custom_call.1} parent=11 // pred_check
          %p123 = pneg %p61
        $region14: #{tpu_custom_call.1} parent=11 // pred_check_branch
          %125 = sbr.rel (%p123) target = $region16
        $region15: #{tpu_custom_call.1} parent=11 // pred_region
          %s127 = ssub.s32 32, 32
          %128 = vsyncadd [#allocation4], %s127
          %s130 = sshll.u32 %s1, 4
          %s131 = int_to_ptr.vmem [resolvable:$true] %s130
          %133 = dma.vmem_to_smem %s131, 32, [#allocation2], [#allocation4]
        $region16: #{tpu_custom_call.1} parent=11 // pred_fallthru
          _
        // Predicated region
        $region17: #{tpu_custom_call.1} parent=11 // pred_check
          %p134 = pneg %p82
        $region18: #{tpu_custom_call.1} parent=11 // pred_check_branch
          %136 = sbr.rel (%p134) target = $region20
        $region19: #{tpu_custom_call.1} parent=11 // pred_region
          %s138 = ssub.s32 16, 16
          %139 = vsyncadd [#allocation6], %s138
          %s141 = sshll.u32 %s2, 4
          %s142 = int_to_ptr.vmem [resolvable:$true] %s141
          %144 = dma.vmem_to_smem %s142, 16, [#allocation5], [#allocation6]
        $region20: #{tpu_custom_call.1} parent=11 // pred_fallthru
          _
      $region12: #{tpu_custom_call.1} parent=5 // pred_fallthru
        _
      %p145 = scmp.lt.s32.totalorder %s14, 2
      // Predicated region
      $region21: #{tpu_custom_call.1} parent=5 // pred_check
        %p146 = pneg %p145
      $region22: #{tpu_custom_call.1} parent=5 // pred_check_branch
        %148 = sbr.rel (%p146) target = $region24
      $region23: #{tpu_custom_call.1} parent=5 // pred_region
        // Predicated region
        $region25: #{tpu_custom_call.1} parent=23 // pred_check
          %p149 = pneg %p34
        $region26: #{tpu_custom_call.1} parent=23 // pred_check_branch
          %151 = sbr.rel (%p149) target = $region28
        $region27: #{tpu_custom_call.1} parent=23 // pred_region
          %p152 = scmp.lt.s32.totalorder %s14, 1
          %s153 = scalar_select %p152, %s14, 1
          %s154 = smul.addr %s153, 12
          %s155 = smul.addr %s154, 4
          %s156 = scalar_lea.vmem %s0, %s155
        $region28: #{tpu_custom_call.1} parent=23 // pred_fallthru
          _
      $region24: #{tpu_custom_call.1} parent=5 // pred_fallthru
        _
      %p157 = scmp.le.s32.totalorder 1, %s14
      %p158 = scmp.lt.s32.totalorder %s14, 3
      %p159 = pnand %p157, %p158
      %p160 = pneg %p159
      // Predicated region
      $region29: #{tpu_custom_call.1} parent=5 // pred_check
        _
      $region30: #{tpu_custom_call.1} parent=5 // pred_check_branch
        %162 = sbr.rel (%p159) target = $region32
      $region31: #{tpu_custom_call.1} parent=5 // pred_region
        %s163 = ssub.s32 %s14, 1
        // Predicated region
        $region33: #{tpu_custom_call.1} parent=31 // pred_check
          %p164 = pneg %p61
        $region34: #{tpu_custom_call.1} parent=31 // pred_check_branch
          %166 = sbr.rel (%p164) target = $region36
        $region35: #{tpu_custom_call.1} parent=31 // pred_region
          %167 = dma.done [#allocation4], 32
        $region36: #{tpu_custom_call.1} parent=31 // pred_fallthru
          _
        // Predicated region
        $region37: #{tpu_custom_call.1} parent=31 // pred_check
          %p168 = pneg %p82
        $region38: #{tpu_custom_call.1} parent=31 // pred_check_branch
          %170 = sbr.rel (%p168) target = $region40
        $region39: #{tpu_custom_call.1} parent=31 // pred_region
          %171 = dma.done [#allocation6], 16
        $region40: #{tpu_custom_call.1} parent=31 // pred_fallthru
          _
        %172 = sfence
        %p173 = scmp.lt.s32.totalorder %s19, 1
        %s174 = scalar_select %p173, %s19, 1
        %s175 = smul.addr %s174, 12
        %s176 = smul.addr %s175, 4
        %s177 = scalar_lea.vmem %s0, %s176
        %p178 = pneg %p40
        %p179 = pneg %p37
        %p180 = pneg %p61
        %p181 = pneg %p58
        %p182 = pneg %p82
        %p183 = pneg %p79
        %p184 = pneg %p108
        %p185 = pneg %p105
        %s186 = sand.u32 %s95, 1
        %s187 = scalar_lea.sflag [#allocation3], %s186
        %s188 = sand.u32 %s95, 1
        %s189 = smul.addr %s188, 64
        %s190 = scalar_lea.vmem [#allocation7], %s189
        %p191 = scmp.lt.s32.totalorder %s19, 1
        %s192 = scalar_select %p191, %s19, 1
        %s193 = smul.addr %s192, 12
        %s194 = smul.addr %s193, 4
        %s195 = scalar_lea.vmem %s0, %s194
        %v196 = vld [vmem:[%s195] sm:$0xf]
        %v197 = vld [vmem:[%s195 + $0x4] sm:$0xf]
        %v198 = vld [vmem:[%s195 + $0x8] sm:$0x1]
        %v199 = vunpack.c.l.bf16 %v196
        %v200 = vunpack.c.l.bf16 %v197
        %v201 = vunpack.c.l.bf16 %v198
        %s202 = sld [smem:[#allocation2]]
        %v203 = vstv %s202
        %v204 = vmul.f32 %v203, %v199
        %v205 = vmul.f32 %v203, %v200
        %v206 = vadd.f32 %v204, 0.0
        %v207 = vadd.f32 %v205, 0.0
        %s208 = sld [smem:[#allocation2 + $0x24]]
        %v209 = vstv %s208
        %v210 = vmul.f32 %v209, %v199
        %v211 = vmul.f32 %v209, %v200
        %v212 = vadd.f32 %v210, 0.0
        %v213 = vadd.f32 %v211, 0.0
        %s214 = sld [smem:[#allocation2 + $0x48]]
        %v215 = vstv %s214
        %v216 = vmul.f32 %v215, %v199
        %v217 = vmul.f32 %v215, %v200
        %v218 = vadd.f32 %v216, 0.0
        %v219 = vadd.f32 %v217, 0.0
        %s220 = sld [smem:[#allocation2 + $0x6c]]
        %v221 = vstv %s220
        %v222 = vmul.f32 %v221, %v199
        %v223 = vmul.f32 %v221, %v200
        %v224 = vadd.f32 %v222, 0.0
        %v225 = vadd.f32 %v223, 0.0
        %s226 = sld [smem:[#allocation2 + $0x1]]
        %v227 = vstv %s226
        %v228 = vmul.f32 %v227, %v199
        %v229 = vmul.f32 %v227, %v200
        %232 = vrot.lane.b32.xlu0 %v228, 127
        %v233 = vpop.permute.xlu0 %232
        %234 = vrot.lane.b32.xlu0 %v229, 127
        %v235 = vpop.permute.xlu0 %234
        %v238 = vadd.f32 %v206, %v233
        %v239 = vadd.f32 %v207, %v235
        %s240 = sld [smem:[#allocation2 + $0x25]]
        %v241 = vstv %s240
        %v242 = vmul.f32 %v241, %v199
        %v243 = vmul.f32 %v241, %v200
        %246 = vrot.lane.b32.xlu0 %v242, 127
        %v247 = vpop.permute.xlu0 %246
        %248 = vrot.lane.b32.xlu0 %v243, 127
        %v249 = vpop.permute.xlu0 %248
        %v252 = vadd.f32 %v212, %v247
        %v253 = vadd.f32 %v213, %v249
        %s254 = sld [smem:[#allocation2 + $0x49]]
        %v255 = vstv %s254
        %v256 = vmul.f32 %v255, %v199
        %v257 = vmul.f32 %v255, %v200
        %260 = vrot.lane.b32.xlu0 %v256, 127
        %v261 = vpop.permute.xlu0 %260
        %262 = vrot.lane.b32.xlu0 %v257, 127
        %v263 = vpop.permute.xlu0 %262
        %v266 = vadd.f32 %v218, %v261
        %v267 = vadd.f32 %v219, %v263
        %s268 = sld [smem:[#allocation2 + $0x6d]]
        %v269 = vstv %s268
        %v270 = vmul.f32 %v269, %v199
        %v271 = vmul.f32 %v269, %v200
        %274 = vrot.lane.b32.xlu0 %v270, 127
        %v275 = vpop.permute.xlu0 %274
        %276 = vrot.lane.b32.xlu0 %v271, 127
        %v277 = vpop.permute.xlu0 %276
        %v280 = vadd.f32 %v224, %v275
        %v281 = vadd.f32 %v225, %v277
        %s282 = sld [smem:[#allocation2 + $0x2]]
        %v283 = vstv %s282
        %v284 = vmul.f32 %v283, %v199
        %v285 = vmul.f32 %v283, %v200
        %288 = vrot.lane.b32.xlu0 %v284, 126
        %v289 = vpop.permute.xlu0 %288
        %290 = vrot.lane.b32.xlu0 %v285, 126
        %v291 = vpop.permute.xlu0 %290
        %v294 = vadd.f32 %v238, %v289
        %v295 = vadd.f32 %v239, %v291
        %s296 = sld [smem:[#allocation2 + $0x26]]
        %v297 = vstv %s296
        %v298 = vmul.f32 %v297, %v199
        %v299 = vmul.f32 %v297, %v200
        %302 = vrot.lane.b32.xlu0 %v298, 126
        %v303 = vpop.permute.xlu0 %302
        %304 = vrot.lane.b32.xlu0 %v299, 126
        %v305 = vpop.permute.xlu0 %304
        %v308 = vadd.f32 %v252, %v303
        %v309 = vadd.f32 %v253, %v305
        %s310 = sld [smem:[#allocation2 + $0x4a]]
        %v311 = vstv %s310
        %v312 = vmul.f32 %v311, %v199
        %v313 = vmul.f32 %v311, %v200
        %316 = vrot.lane.b32.xlu0 %v312, 126
        %v317 = vpop.permute.xlu0 %316
        %318 = vrot.lane.b32.xlu0 %v313, 126
        %v319 = vpop.permute.xlu0 %318
        %v322 = vadd.f32 %v266, %v317
        %v323 = vadd.f32 %v267, %v319
        %s324 = sld [smem:[#allocation2 + $0x6e]]
        %v325 = vstv %s324
        %v326 = vmul.f32 %v325, %v199
        %v327 = vmul.f32 %v325, %v200
        %330 = vrot.lane.b32.xlu0 %v326, 126
        %v331 = vpop.permute.xlu0 %330
        %332 = vrot.lane.b32.xlu0 %v327, 126
        %v333 = vpop.permute.xlu0 %332
        %v336 = vadd.f32 %v280, %v331
        %v337 = vadd.f32 %v281, %v333
        %s338 = sld [smem:[#allocation2 + $0x3]]
        %v339 = vstv %s338
        %v340 = vmul.f32 %v339, %v199
        %v341 = vmul.f32 %v339, %v200
        %v342 = vmul.f32 %v339, %v201
        %vm346 = vcmask 1046528
        %v347 = vrot.slane %v340, 1
        %v348 = vrot.slane %v341, 1
        %v349 = vsel %vm346, %v347, %v348
        %v350 = vrot.slane %v342, 1
        %v351 = vsel %vm346, %v348, %v350
        %v354 = vadd.f32 %v294, %v349
        %v355 = vadd.f32 %v295, %v351
        %s356 = sld [smem:[#allocation2 + $0x27]]
        %v357 = vstv %s356
        %v358 = vmul.f32 %v357, %v199
        %v359 = vmul.f32 %v357, %v200
        %v360 = vmul.f32 %v357, %v201
        %v364 = vrot.slane %v358, 1
        %v365 = vrot.slane %v359, 1
        %v366 = vsel %vm346, %v364, %v365
        %v367 = vrot.slane %v360, 1
        %v368 = vsel %vm346, %v365, %v367
        %v371 = vadd.f32 %v308, %v366
        %v372 = vadd.f32 %v309, %v368
        %s373 = sld [smem:[#allocation2 + $0x4b]]
        %v374 = vstv %s373
        %v375 = vmul.f32 %v374, %v199
        %v376 = vmul.f32 %v374, %v200
        %v377 = vmul.f32 %v374, %v201
        %v381 = vrot.slane %v375, 1
        %v382 = vrot.slane %v376, 1
        %v383 = vsel %vm346, %v381, %v382
        %v384 = vrot.slane %v377, 1
        %v385 = vsel %vm346, %v382, %v384
        %v388 = vadd.f32 %v322, %v383
        %v389 = vadd.f32 %v323, %v385
        %s390 = sld [smem:[#allocation2 + $0x6f]]
        %v391 = vstv %s390
        %v392 = vmul.f32 %v391, %v199
        %v393 = vmul.f32 %v391, %v200
        %v394 = vmul.f32 %v391, %v201
        %v398 = vrot.slane %v392, 1
        %v399 = vrot.slane %v393, 1
        %v400 = vsel %vm346, %v398, %v399
        %v401 = vrot.slane %v394, 1
        %v402 = vsel %vm346, %v399, %v401
        %v405 = vadd.f32 %v336, %v400
        %v406 = vadd.f32 %v337, %v402
        %s407 = sld [smem:[#allocation2 + $0x4]]
        %v408 = vstv %s407
        %v409 = vmul.f32 %v408, %v199
        %v410 = vmul.f32 %v408, %v200
        %v411 = vmul.f32 %v408, %v201
        %v415 = vrot.slane %v409, 1
        %v416 = vrot.slane %v410, 1
        %v417 = vsel %vm346, %v415, %v416
        %v418 = vrot.slane %v411, 1
        %v419 = vsel %vm346, %v416, %v418
        %420 = vrot.lane.b32.xlu0 %v417, 127
        %v421 = vpop.permute.xlu0 %420
        %422 = vrot.lane.b32.xlu0 %v419, 127
        %v423 = vpop.permute.xlu0 %422
        %v426 = vadd.f32 %v354, %v421
        %v427 = vadd.f32 %v355, %v423
        %s428 = sld [smem:[#allocation2 + $0x28]]
        %v429 = vstv %s428
        %v430 = vmul.f32 %v429, %v199
        %v431 = vmul.f32 %v429, %v200
        %v432 = vmul.f32 %v429, %v201
        %v436 = vrot.slane %v430, 1
        %v437 = vrot.slane %v431, 1
        %v438 = vsel %vm346, %v436, %v437
        %v439 = vrot.slane %v432, 1
        %v440 = vsel %vm346, %v437, %v439
        %441 = vrot.lane.b32.xlu0 %v438, 127
        %v442 = vpop.permute.xlu0 %441
        %443 = vrot.lane.b32.xlu0 %v440, 127
        %v444 = vpop.permute.xlu0 %443
        %v447 = vadd.f32 %v371, %v442
        %v448 = vadd.f32 %v372, %v444
        %s449 = sld [smem:[#allocation2 + $0x4c]]
        %v450 = vstv %s449
        %v451 = vmul.f32 %v450, %v199
        %v452 = vmul.f32 %v450, %v200
        %v453 = vmul.f32 %v450, %v201
        %v457 = vrot.slane %v451, 1
        %v458 = vrot.slane %v452, 1
        %v459 = vsel %vm346, %v457, %v458
        %v460 = vrot.slane %v453, 1
        %v461 = vsel %vm346, %v458, %v460
        %462 = vrot.lane.b32.xlu0 %v459, 127
        %v463 = vpop.permute.xlu0 %462
        %464 = vrot.lane.b32.xlu0 %v461, 127
        %v465 = vpop.permute.xlu0 %464
        %v468 = vadd.f32 %v388, %v463
        %v469 = vadd.f32 %v389, %v465
        %s470 = sld [smem:[#allocation2 + $0x70]]
        %v471 = vstv %s470
        %v472 = vmul.f32 %v471, %v199
        %v473 = vmul.f32 %v471, %v200
        %v474 = vmul.f32 %v471, %v201
        %v478 = vrot.slane %v472, 1
        %v479 = vrot.slane %v473, 1
        %v480 = vsel %vm346, %v478, %v479
        %v481 = vrot.slane %v474, 1
        %v482 = vsel %vm346, %v479, %v481
        %483 = vrot.lane.b32.xlu0 %v480, 127
        %v484 = vpop.permute.xlu0 %483
        %485 = vrot.lane.b32.xlu0 %v482, 127
        %v486 = vpop.permute.xlu0 %485
        %v489 = vadd.f32 %v405, %v484
        %v490 = vadd.f32 %v406, %v486
        %s491 = sld [smem:[#allocation2 + $0x5]]
        %v492 = vstv %s491
        %v493 = vmul.f32 %v492, %v199
        %v494 = vmul.f32 %v492, %v200
        %v495 = vmul.f32 %v492, %v201
        %v499 = vrot.slane %v493, 1
        %v500 = vrot.slane %v494, 1
        %v501 = vsel %vm346, %v499, %v500
        %v502 = vrot.slane %v495, 1
        %v503 = vsel %vm346, %v500, %v502
        %504 = vrot.lane.b32.xlu0 %v501, 126
        %v505 = vpop.permute.xlu0 %504
        %506 = vrot.lane.b32.xlu0 %v503, 126
        %v507 = vpop.permute.xlu0 %506
        %v510 = vadd.f32 %v426, %v505
        %v511 = vadd.f32 %v427, %v507
        %s512 = sld [smem:[#allocation2 + $0x29]]
        %v513 = vstv %s512
        %v514 = vmul.f32 %v513, %v199
        %v515 = vmul.f32 %v513, %v200
        %v516 = vmul.f32 %v513, %v201
        %v520 = vrot.slane %v514, 1
        %v521 = vrot.slane %v515, 1
        %v522 = vsel %vm346, %v520, %v521
        %v523 = vrot.slane %v516, 1
        %v524 = vsel %vm346, %v521, %v523
        %525 = vrot.lane.b32.xlu0 %v522, 126
        %v526 = vpop.permute.xlu0 %525
        %527 = vrot.lane.b32.xlu0 %v524, 126
        %v528 = vpop.permute.xlu0 %527
        %v531 = vadd.f32 %v447, %v526
        %v532 = vadd.f32 %v448, %v528
        %s533 = sld [smem:[#allocation2 + $0x4d]]
        %v534 = vstv %s533
        %v535 = vmul.f32 %v534, %v199
        %v536 = vmul.f32 %v534, %v200
        %v537 = vmul.f32 %v534, %v201
        %v541 = vrot.slane %v535, 1
        %v542 = vrot.slane %v536, 1
        %v543 = vsel %vm346, %v541, %v542
        %v544 = vrot.slane %v537, 1
        %v545 = vsel %vm346, %v542, %v544
        %546 = vrot.lane.b32.xlu0 %v543, 126
        %v547 = vpop.permute.xlu0 %546
        %548 = vrot.lane.b32.xlu0 %v545, 126
        %v549 = vpop.permute.xlu0 %548
        %v552 = vadd.f32 %v468, %v547
        %v553 = vadd.f32 %v469, %v549
        %s554 = sld [smem:[#allocation2 + $0x71]]
        %v555 = vstv %s554
        %v556 = vmul.f32 %v555, %v199
        %v557 = vmul.f32 %v555, %v200
        %v558 = vmul.f32 %v555, %v201
        %v562 = vrot.slane %v556, 1
        %v563 = vrot.slane %v557, 1
        %v564 = vsel %vm346, %v562, %v563
        %v565 = vrot.slane %v558, 1
        %v566 = vsel %vm346, %v563, %v565
        %567 = vrot.lane.b32.xlu0 %v564, 126
        %v568 = vpop.permute.xlu0 %567
        %569 = vrot.lane.b32.xlu0 %v566, 126
        %v570 = vpop.permute.xlu0 %569
        %v573 = vadd.f32 %v489, %v568
        %v574 = vadd.f32 %v490, %v570
        %s575 = sld [smem:[#allocation2 + $0x6]]
        %v576 = vstv %s575
        %v577 = vmul.f32 %v576, %v199
        %v578 = vmul.f32 %v576, %v200
        %v579 = vmul.f32 %v576, %v201
        %vm583 = vcmask 1045504
        %v584 = vrot.slane %v577, 2
        %v585 = vrot.slane %v578, 2
        %v586 = vsel %vm583, %v584, %v585
        %v587 = vrot.slane %v579, 2
        %v588 = vsel %vm583, %v585, %v587
        %v591 = vadd.f32 %v510, %v586
        %v592 = vadd.f32 %v511, %v588
        %s593 = sld [smem:[#allocation2 + $0x2a]]
        %v594 = vstv %s593
        %v595 = vmul.f32 %v594, %v199
        %v596 = vmul.f32 %v594, %v200
        %v597 = vmul.f32 %v594, %v201
        %v601 = vrot.slane %v595, 2
        %v602 = vrot.slane %v596, 2
        %v603 = vsel %vm583, %v601, %v602
        %v604 = vrot.slane %v597, 2
        %v605 = vsel %vm583, %v602, %v604
        %v608 = vadd.f32 %v531, %v603
        %v609 = vadd.f32 %v532, %v605
        %s610 = sld [smem:[#allocation2 + $0x4e]]
        %v611 = vstv %s610
        %v612 = vmul.f32 %v611, %v199
        %v613 = vmul.f32 %v611, %v200
        %v614 = vmul.f32 %v611, %v201
        %v618 = vrot.slane %v612, 2
        %v619 = vrot.slane %v613, 2
        %v620 = vsel %vm583, %v618, %v619
        %v621 = vrot.slane %v614, 2
        %v622 = vsel %vm583, %v619, %v621
        %v625 = vadd.f32 %v552, %v620
        %v626 = vadd.f32 %v553, %v622
        %s627 = sld [smem:[#allocation2 + $0x72]]
        %v628 = vstv %s627
        %v629 = vmul.f32 %v628, %v199
        %v630 = vmul.f32 %v628, %v200
        %v631 = vmul.f32 %v628, %v201
        %v635 = vrot.slane %v629, 2
        %v636 = vrot.slane %v630, 2
        %v637 = vsel %vm583, %v635, %v636
        %v638 = vrot.slane %v631, 2
        %v639 = vsel %vm583, %v636, %v638
        %v642 = vadd.f32 %v573, %v637
        %v643 = vadd.f32 %v574, %v639
        %s644 = sld [smem:[#allocation2 + $0x7]]
        %v645 = vstv %s644
        %v646 = vmul.f32 %v645, %v199
        %v647 = vmul.f32 %v645, %v200
        %v648 = vmul.f32 %v645, %v201
        %v652 = vrot.slane %v646, 2
        %v653 = vrot.slane %v647, 2
        %v654 = vsel %vm583, %v652, %v653
        %v655 = vrot.slane %v648, 2
        %v656 = vsel %vm583, %v653, %v655
        %657 = vrot.lane.b32.xlu0 %v654, 127
        %v658 = vpop.permute.xlu0 %657
        %659 = vrot.lane.b32.xlu0 %v656, 127
        %v660 = vpop.permute.xlu0 %659
        %v663 = vadd.f32 %v591, %v658
        %v664 = vadd.f32 %v592, %v660
        %s665 = sld [smem:[#allocation2 + $0x2b]]
        %v666 = vstv %s665
        %v667 = vmul.f32 %v666, %v199
        %v668 = vmul.f32 %v666, %v200
        %v669 = vmul.f32 %v666, %v201
        %v673 = vrot.slane %v667, 2
        %v674 = vrot.slane %v668, 2
        %v675 = vsel %vm583, %v673, %v674
        %v676 = vrot.slane %v669, 2
        %v677 = vsel %vm583, %v674, %v676
        %678 = vrot.lane.b32.xlu0 %v675, 127
        %v679 = vpop.permute.xlu0 %678
        %680 = vrot.lane.b32.xlu0 %v677, 127
        %v681 = vpop.permute.xlu0 %680
        %v684 = vadd.f32 %v608, %v679
        %v685 = vadd.f32 %v609, %v681
        %s686 = sld [smem:[#allocation2 + $0x4f]]
        %v687 = vstv %s686
        %v688 = vmul.f32 %v687, %v199
        %v689 = vmul.f32 %v687, %v200
        %v690 = vmul.f32 %v687, %v201
        %v694 = vrot.slane %v688, 2
        %v695 = vrot.slane %v689, 2
        %v696 = vsel %vm583, %v694, %v695
        %v697 = vrot.slane %v690, 2
        %v698 = vsel %vm583, %v695, %v697
        %699 = vrot.lane.b32.xlu0 %v696, 127
        %v700 = vpop.permute.xlu0 %699
        %701 = vrot.lane.b32.xlu0 %v698, 127
        %v702 = vpop.permute.xlu0 %701
        %v705 = vadd.f32 %v625, %v700
        %v706 = vadd.f32 %v626, %v702
        %s707 = sld [smem:[#allocation2 + $0x73]]
        %v708 = vstv %s707
        %v709 = vmul.f32 %v708, %v199
        %v710 = vmul.f32 %v708, %v200
        %v711 = vmul.f32 %v708, %v201
        %v715 = vrot.slane %v709, 2
        %v716 = vrot.slane %v710, 2
        %v717 = vsel %vm583, %v715, %v716
        %v718 = vrot.slane %v711, 2
        %v719 = vsel %vm583, %v716, %v718
        %720 = vrot.lane.b32.xlu0 %v717, 127
        %v721 = vpop.permute.xlu0 %720
        %722 = vrot.lane.b32.xlu0 %v719, 127
        %v723 = vpop.permute.xlu0 %722
        %v726 = vadd.f32 %v642, %v721
        %v727 = vadd.f32 %v643, %v723
        %s728 = sld [smem:[#allocation2 + $0x8]]
        %v729 = vstv %s728
        %v730 = vmul.f32 %v729, %v199
        %v731 = vmul.f32 %v729, %v200
        %v732 = vmul.f32 %v729, %v201
        %v736 = vrot.slane %v730, 2
        %v737 = vrot.slane %v731, 2
        %v738 = vsel %vm583, %v736, %v737
        %v739 = vrot.slane %v732, 2
        %v740 = vsel %vm583, %v737, %v739
        %741 = vrot.lane.b32.xlu0 %v738, 126
        %v742 = vpop.permute.xlu0 %741
        %743 = vrot.lane.b32.xlu0 %v740, 126
        %v744 = vpop.permute.xlu0 %743
        %v747 = vadd.f32 %v663, %v742
        %v748 = vadd.f32 %v664, %v744
        %s749 = sld [smem:[#allocation2 + $0x2c]]
        %v750 = vstv %s749
        %v751 = vmul.f32 %v750, %v199
        %v752 = vmul.f32 %v750, %v200
        %v753 = vmul.f32 %v750, %v201
        %v757 = vrot.slane %v751, 2
        %v758 = vrot.slane %v752, 2
        %v759 = vsel %vm583, %v757, %v758
        %v760 = vrot.slane %v753, 2
        %v761 = vsel %vm583, %v758, %v760
        %762 = vrot.lane.b32.xlu0 %v759, 126
        %v763 = vpop.permute.xlu0 %762
        %764 = vrot.lane.b32.xlu0 %v761, 126
        %v765 = vpop.permute.xlu0 %764
        %v768 = vadd.f32 %v684, %v763
        %v769 = vadd.f32 %v685, %v765
        %s770 = sld [smem:[#allocation2 + $0x50]]
        %v771 = vstv %s770
        %v772 = vmul.f32 %v771, %v199
        %v773 = vmul.f32 %v771, %v200
        %v774 = vmul.f32 %v771, %v201
        %v778 = vrot.slane %v772, 2
        %v779 = vrot.slane %v773, 2
        %v780 = vsel %vm583, %v778, %v779
        %v781 = vrot.slane %v774, 2
        %v782 = vsel %vm583, %v779, %v781
        %783 = vrot.lane.b32.xlu0 %v780, 126
        %v784 = vpop.permute.xlu0 %783
        %785 = vrot.lane.b32.xlu0 %v782, 126
        %v786 = vpop.permute.xlu0 %785
        %v789 = vadd.f32 %v705, %v784
        %v790 = vadd.f32 %v706, %v786
        %s791 = sld [smem:[#allocation2 + $0x74]]
        %v792 = vstv %s791
        %v793 = vmul.f32 %v792, %v199
        %v794 = vmul.f32 %v792, %v200
        %v795 = vmul.f32 %v792, %v201
        %v799 = vrot.slane %v793, 2
        %v800 = vrot.slane %v794, 2
        %v801 = vsel %vm583, %v799, %v800
        %v802 = vrot.slane %v795, 2
        %v803 = vsel %vm583, %v800, %v802
        %804 = vrot.lane.b32.xlu0 %v801, 126
        %v805 = vpop.permute.xlu0 %804
        %806 = vrot.lane.b32.xlu0 %v803, 126
        %v807 = vpop.permute.xlu0 %806
        %v810 = vadd.f32 %v726, %v805
        %v811 = vadd.f32 %v727, %v807
        %s812 = scalar_lea.vmem %s195, 12
        %v813 = vld [vmem:[%s812] sm:$0xf]
        %v814 = vld [vmem:[%s812 + $0x4] sm:$0xf]
        %v815 = vld [vmem:[%s812 + $0x8] sm:$0x1]
        %v816 = vunpack.c.l.bf16 %v813
        %v817 = vunpack.c.l.bf16 %v814
        %v818 = vunpack.c.l.bf16 %v815
        %s819 = sld [smem:[#allocation2 + $0x9]]
        %v820 = vstv %s819
        %v821 = vmul.f32 %v820, %v816
        %v822 = vmul.f32 %v820, %v817
        %v823 = vadd.f32 %v747, %v821
        %v824 = vadd.f32 %v748, %v822
        %s825 = sld [smem:[#allocation2 + $0x2d]]
        %v826 = vstv %s825
        %v827 = vmul.f32 %v826, %v816
        %v828 = vmul.f32 %v826, %v817
        %v829 = vadd.f32 %v768, %v827
        %v830 = vadd.f32 %v769, %v828
        %s831 = sld [smem:[#allocation2 + $0x51]]
        %v832 = vstv %s831
        %v833 = vmul.f32 %v832, %v816
        %v834 = vmul.f32 %v832, %v817
        %v835 = vadd.f32 %v789, %v833
        %v836 = vadd.f32 %v790, %v834
        %s837 = sld [smem:[#allocation2 + $0x75]]
        %v838 = vstv %s837
        %v839 = vmul.f32 %v838, %v816
        %v840 = vmul.f32 %v838, %v817
        %v841 = vadd.f32 %v810, %v839
        %v842 = vadd.f32 %v811, %v840
        %s843 = sld [smem:[#allocation2 + $0xa]]
        %v844 = vstv %s843
        %v845 = vmul.f32 %v844, %v816
        %v846 = vmul.f32 %v844, %v817
        %849 = vrot.lane.b32.xlu0 %v845, 127
        %v850 = vpop.permute.xlu0 %849
        %851 = vrot.lane.b32.xlu0 %v846, 127
        %v852 = vpop.permute.xlu0 %851
        %v855 = vadd.f32 %v823, %v850
        %v856 = vadd.f32 %v824, %v852
        %s857 = sld [smem:[#allocation2 + $0x2e]]
        %v858 = vstv %s857
        %v859 = vmul.f32 %v858, %v816
        %v860 = vmul.f32 %v858, %v817
        %863 = vrot.lane.b32.xlu0 %v859, 127
        %v864 = vpop.permute.xlu0 %863
        %865 = vrot.lane.b32.xlu0 %v860, 127
        %v866 = vpop.permute.xlu0 %865
        %v869 = vadd.f32 %v829, %v864
        %v870 = vadd.f32 %v830, %v866
        %s871 = sld [smem:[#allocation2 + $0x52]]
        %v872 = vstv %s871
        %v873 = vmul.f32 %v872, %v816
        %v874 = vmul.f32 %v872, %v817
        %877 = vrot.lane.b32.xlu0 %v873, 127
        %v878 = vpop.permute.xlu0 %877
        %879 = vrot.lane.b32.xlu0 %v874, 127
        %v880 = vpop.permute.xlu0 %879
        %v883 = vadd.f32 %v835, %v878
        %v884 = vadd.f32 %v836, %v880
        %s885 = sld [smem:[#allocation2 + $0x76]]
        %v886 = vstv %s885
        %v887 = vmul.f32 %v886, %v816
        %v888 = vmul.f32 %v886, %v817
        %891 = vrot.lane.b32.xlu0 %v887, 127
        %v892 = vpop.permute.xlu0 %891
        %893 = vrot.lane.b32.xlu0 %v888, 127
        %v894 = vpop.permute.xlu0 %893
        %v897 = vadd.f32 %v841, %v892
        %v898 = vadd.f32 %v842, %v894
        %s899 = sld [smem:[#allocation2 + $0xb]]
        %v900 = vstv %s899
        %v901 = vmul.f32 %v900, %v816
        %v902 = vmul.f32 %v900, %v817
        %905 = vrot.lane.b32.xlu0 %v901, 126
        %v906 = vpop.permute.xlu0 %905
        %907 = vrot.lane.b32.xlu0 %v902, 126
        %v908 = vpop.permute.xlu0 %907
        %v911 = vadd.f32 %v855, %v906
        %v912 = vadd.f32 %v856, %v908
        %s913 = sld [smem:[#allocation2 + $0x2f]]
        %v914 = vstv %s913
        %v915 = vmul.f32 %v914, %v816
        %v916 = vmul.f32 %v914, %v817
        %919 = vrot.lane.b32.xlu0 %v915, 126
        %v920 = vpop.permute.xlu0 %919
        %921 = vrot.lane.b32.xlu0 %v916, 126
        %v922 = vpop.permute.xlu0 %921
        %v925 = vadd.f32 %v869, %v920
        %v926 = vadd.f32 %v870, %v922
        %s927 = sld [smem:[#allocation2 + $0x53]]
        %v928 = vstv %s927
        %v929 = vmul.f32 %v928, %v816
        %v930 = vmul.f32 %v928, %v817
        %933 = vrot.lane.b32.xlu0 %v929, 126
        %v934 = vpop.permute.xlu0 %933
        %935 = vrot.lane.b32.xlu0 %v930, 126
        %v936 = vpop.permute.xlu0 %935
        %v939 = vadd.f32 %v883, %v934
        %v940 = vadd.f32 %v884, %v936
        %s941 = sld [smem:[#allocation2 + $0x77]]
        %v942 = vstv %s941
        %v943 = vmul.f32 %v942, %v816
        %v944 = vmul.f32 %v942, %v817
        %947 = vrot.lane.b32.xlu0 %v943, 126
        %v948 = vpop.permute.xlu0 %947
        %949 = vrot.lane.b32.xlu0 %v944, 126
        %v950 = vpop.permute.xlu0 %949
        %v953 = vadd.f32 %v897, %v948
        %v954 = vadd.f32 %v898, %v950
        %s955 = sld [smem:[#allocation2 + $0xc]]
        %v956 = vstv %s955
        %v957 = vmul.f32 %v956, %v816
        %v958 = vmul.f32 %v956, %v817
        %v959 = vmul.f32 %v956, %v818
        %v963 = vrot.slane %v957, 1
        %v964 = vrot.slane %v958, 1
        %v965 = vsel %vm346, %v963, %v964
        %v966 = vrot.slane %v959, 1
        %v967 = vsel %vm346, %v964, %v966
        %v970 = vadd.f32 %v911, %v965
        %v971 = vadd.f32 %v912, %v967
        %s972 = sld [smem:[#allocation2 + $0x30]]
        %v973 = vstv %s972
        %v974 = vmul.f32 %v973, %v816
        %v975 = vmul.f32 %v973, %v817
        %v976 = vmul.f32 %v973, %v818
        %v980 = vrot.slane %v974, 1
        %v981 = vrot.slane %v975, 1
        %v982 = vsel %vm346, %v980, %v981
        %v983 = vrot.slane %v976, 1
        %v984 = vsel %vm346, %v981, %v983
        %v987 = vadd.f32 %v925, %v982
        %v988 = vadd.f32 %v926, %v984
        %s989 = sld [smem:[#allocation2 + $0x54]]
        %v990 = vstv %s989
        %v991 = vmul.f32 %v990, %v816
        %v992 = vmul.f32 %v990, %v817
        %v993 = vmul.f32 %v990, %v818
        %v997 = vrot.slane %v991, 1
        %v998 = vrot.slane %v992, 1
        %v999 = vsel %vm346, %v997, %v998
        %v1000 = vrot.slane %v993, 1
        %v1001 = vsel %vm346, %v998, %v1000
        %v1004 = vadd.f32 %v939, %v999
        %v1005 = vadd.f32 %v940, %v1001
        %s1006 = sld [smem:[#allocation2 + $0x78]]
        %v1007 = vstv %s1006
        %v1008 = vmul.f32 %v1007, %v816
        %v1009 = vmul.f32 %v1007, %v817
        %v1010 = vmul.f32 %v1007, %v818
        %v1014 = vrot.slane %v1008, 1
        %v1015 = vrot.slane %v1009, 1
        %v1016 = vsel %vm346, %v1014, %v1015
        %v1017 = vrot.slane %v1010, 1
        %v1018 = vsel %vm346, %v1015, %v1017
        %v1021 = vadd.f32 %v953, %v1016
        %v1022 = vadd.f32 %v954, %v1018
        %s1023 = sld [smem:[#allocation2 + $0xd]]
        %v1024 = vstv %s1023
        %v1025 = vmul.f32 %v1024, %v816
        %v1026 = vmul.f32 %v1024, %v817
        %v1027 = vmul.f32 %v1024, %v818
        %v1031 = vrot.slane %v1025, 1
        %v1032 = vrot.slane %v1026, 1
        %v1033 = vsel %vm346, %v1031, %v1032
        %v1034 = vrot.slane %v1027, 1
        %v1035 = vsel %vm346, %v1032, %v1034
        %1036 = vrot.lane.b32.xlu0 %v1033, 127
        %v1037 = vpop.permute.xlu0 %1036
        %1038 = vrot.lane.b32.xlu0 %v1035, 127
        %v1039 = vpop.permute.xlu0 %1038
        %v1042 = vadd.f32 %v970, %v1037
        %v1043 = vadd.f32 %v971, %v1039
        %s1044 = sld [smem:[#allocation2 + $0x31]]
        %v1045 = vstv %s1044
        %v1046 = vmul.f32 %v1045, %v816
        %v1047 = vmul.f32 %v1045, %v817
        %v1048 = vmul.f32 %v1045, %v818
        %v1052 = vrot.slane %v1046, 1
        %v1053 = vrot.slane %v1047, 1
        %v1054 = vsel %vm346, %v1052, %v1053
        %v1055 = vrot.slane %v1048, 1
        %v1056 = vsel %vm346, %v1053, %v1055
        %1057 = vrot.lane.b32.xlu0 %v1054, 127
        %v1058 = vpop.permute.xlu0 %1057
        %1059 = vrot.lane.b32.xlu0 %v1056, 127
        %v1060 = vpop.permute.xlu0 %1059
        %v1063 = vadd.f32 %v987, %v1058
        %v1064 = vadd.f32 %v988, %v1060
        %s1065 = sld [smem:[#allocation2 + $0x55]]
        %v1066 = vstv %s1065
        %v1067 = vmul.f32 %v1066, %v816
        %v1068 = vmul.f32 %v1066, %v817
        %v1069 = vmul.f32 %v1066, %v818
        %v1073 = vrot.slane %v1067, 1
        %v1074 = vrot.slane %v1068, 1
        %v1075 = vsel %vm346, %v1073, %v1074
        %v1076 = vrot.slane %v1069, 1
        %v1077 = vsel %vm346, %v1074, %v1076
        %1078 = vrot.lane.b32.xlu0 %v1075, 127
        %v1079 = vpop.permute.xlu0 %1078
        %1080 = vrot.lane.b32.xlu0 %v1077, 127
        %v1081 = vpop.permute.xlu0 %1080
        %v1084 = vadd.f32 %v1004, %v1079
        %v1085 = vadd.f32 %v1005, %v1081
        %s1086 = sld [smem:[#allocation2 + $0x79]]
        %v1087 = vstv %s1086
        %v1088 = vmul.f32 %v1087, %v816
        %v1089 = vmul.f32 %v1087, %v817
        %v1090 = vmul.f32 %v1087, %v818
        %v1094 = vrot.slane %v1088, 1
        %v1095 = vrot.slane %v1089, 1
        %v1096 = vsel %vm346, %v1094, %v1095
        %v1097 = vrot.slane %v1090, 1
        %v1098 = vsel %vm346, %v1095, %v1097
        %1099 = vrot.lane.b32.xlu0 %v1096, 127
        %v1100 = vpop.permute.xlu0 %1099
        %1101 = vrot.lane.b32.xlu0 %v1098, 127
        %v1102 = vpop.permute.xlu0 %1101
        %v1105 = vadd.f32 %v1021, %v1100
        %v1106 = vadd.f32 %v1022, %v1102
        %s1107 = sld [smem:[#allocation2 + $0xe]]
        %v1108 = vstv %s1107
        %v1109 = vmul.f32 %v1108, %v816
        %v1110 = vmul.f32 %v1108, %v817
        %v1111 = vmul.f32 %v1108, %v818
        %v1115 = vrot.slane %v1109, 1
        %v1116 = vrot.slane %v1110, 1
        %v1117 = vsel %vm346, %v1115, %v1116
        %v1118 = vrot.slane %v1111, 1
        %v1119 = vsel %vm346, %v1116, %v1118
        %1120 = vrot.lane.b32.xlu0 %v1117, 126
        %v1121 = vpop.permute.xlu0 %1120
        %1122 = vrot.lane.b32.xlu0 %v1119, 126
        %v1123 = vpop.permute.xlu0 %1122
        %v1126 = vadd.f32 %v1042, %v1121
        %v1127 = vadd.f32 %v1043, %v1123
        %s1128 = sld [smem:[#allocation2 + $0x32]]
        %v1129 = vstv %s1128
        %v1130 = vmul.f32 %v1129, %v816
        %v1131 = vmul.f32 %v1129, %v817
        %v1132 = vmul.f32 %v1129, %v818
        %v1136 = vrot.slane %v1130, 1
        %v1137 = vrot.slane %v1131, 1
        %v1138 = vsel %vm346, %v1136, %v1137
        %v1139 = vrot.slane %v1132, 1
        %v1140 = vsel %vm346, %v1137, %v1139
        %1141 = vrot.lane.b32.xlu0 %v1138, 126
        %v1142 = vpop.permute.xlu0 %1141
        %1143 = vrot.lane.b32.xlu0 %v1140, 126
        %v1144 = vpop.permute.xlu0 %1143
        %v1147 = vadd.f32 %v1063, %v1142
        %v1148 = vadd.f32 %v1064, %v1144
        %s1149 = sld [smem:[#allocation2 + $0x56]]
        %v1150 = vstv %s1149
        %v1151 = vmul.f32 %v1150, %v816
        %v1152 = vmul.f32 %v1150, %v817
        %v1153 = vmul.f32 %v1150, %v818
        %v1157 = vrot.slane %v1151, 1
        %v1158 = vrot.slane %v1152, 1
        %v1159 = vsel %vm346, %v1157, %v1158
        %v1160 = vrot.slane %v1153, 1
        %v1161 = vsel %vm346, %v1158, %v1160
        %1162 = vrot.lane.b32.xlu0 %v1159, 126
        %v1163 = vpop.permute.xlu0 %1162
        %1164 = vrot.lane.b32.xlu0 %v1161, 126
        %v1165 = vpop.permute.xlu0 %1164
        %v1168 = vadd.f32 %v1084, %v1163
        %v1169 = vadd.f32 %v1085, %v1165
        %s1170 = sld [smem:[#allocation2 + $0x7a]]
        %v1171 = vstv %s1170
        %v1172 = vmul.f32 %v1171, %v816
        %v1173 = vmul.f32 %v1171, %v817
        %v1174 = vmul.f32 %v1171, %v818
        %v1178 = vrot.slane %v1172, 1
        %v1179 = vrot.slane %v1173, 1
        %v1180 = vsel %vm346, %v1178, %v1179
        %v1181 = vrot.slane %v1174, 1
        %v1182 = vsel %vm346, %v1179, %v1181
        %1183 = vrot.lane.b32.xlu0 %v1180, 126
        %v1184 = vpop.permute.xlu0 %1183
        %1185 = vrot.lane.b32.xlu0 %v1182, 126
        %v1186 = vpop.permute.xlu0 %1185
        %v1189 = vadd.f32 %v1105, %v1184
        %v1190 = vadd.f32 %v1106, %v1186
        %s1191 = sld [smem:[#allocation2 + $0xf]]
        %v1192 = vstv %s1191
        %v1193 = vmul.f32 %v1192, %v816
        %v1194 = vmul.f32 %v1192, %v817
        %v1195 = vmul.f32 %v1192, %v818
        %v1199 = vrot.slane %v1193, 2
        %v1200 = vrot.slane %v1194, 2
        %v1201 = vsel %vm583, %v1199, %v1200
        %v1202 = vrot.slane %v1195, 2
        %v1203 = vsel %vm583, %v1200, %v1202
        %v1206 = vadd.f32 %v1126, %v1201
        %v1207 = vadd.f32 %v1127, %v1203
        %s1208 = sld [smem:[#allocation2 + $0x33]]
        %v1209 = vstv %s1208
        %v1210 = vmul.f32 %v1209, %v816
        %v1211 = vmul.f32 %v1209, %v817
        %v1212 = vmul.f32 %v1209, %v818
        %v1216 = vrot.slane %v1210, 2
        %v1217 = vrot.slane %v1211, 2
        %v1218 = vsel %vm583, %v1216, %v1217
        %v1219 = vrot.slane %v1212, 2
        %v1220 = vsel %vm583, %v1217, %v1219
        %v1223 = vadd.f32 %v1147, %v1218
        %v1224 = vadd.f32 %v1148, %v1220
        %s1225 = sld [smem:[#allocation2 + $0x57]]
        %v1226 = vstv %s1225
        %v1227 = vmul.f32 %v1226, %v816
        %v1228 = vmul.f32 %v1226, %v817
        %v1229 = vmul.f32 %v1226, %v818
        %v1233 = vrot.slane %v1227, 2
        %v1234 = vrot.slane %v1228, 2
        %v1235 = vsel %vm583, %v1233, %v1234
        %v1236 = vrot.slane %v1229, 2
        %v1237 = vsel %vm583, %v1234, %v1236
        %v1240 = vadd.f32 %v1168, %v1235
        %v1241 = vadd.f32 %v1169, %v1237
        %s1242 = sld [smem:[#allocation2 + $0x7b]]
        %v1243 = vstv %s1242
        %v1244 = vmul.f32 %v1243, %v816
        %v1245 = vmul.f32 %v1243, %v817
        %v1246 = vmul.f32 %v1243, %v818
        %v1250 = vrot.slane %v1244, 2
        %v1251 = vrot.slane %v1245, 2
        %v1252 = vsel %vm583, %v1250, %v1251
        %v1253 = vrot.slane %v1246, 2
        %v1254 = vsel %vm583, %v1251, %v1253
        %v1257 = vadd.f32 %v1189, %v1252
        %v1258 = vadd.f32 %v1190, %v1254
        %s1259 = sld [smem:[#allocation2 + $0x10]]
        %v1260 = vstv %s1259
        %v1261 = vmul.f32 %v1260, %v816
        %v1262 = vmul.f32 %v1260, %v817
        %v1263 = vmul.f32 %v1260, %v818
        %v1267 = vrot.slane %v1261, 2
        %v1268 = vrot.slane %v1262, 2
        %v1269 = vsel %vm583, %v1267, %v1268
        %v1270 = vrot.slane %v1263, 2
        %v1271 = vsel %vm583, %v1268, %v1270
        %1272 = vrot.lane.b32.xlu0 %v1269, 127
        %v1273 = vpop.permute.xlu0 %1272
        %1274 = vrot.lane.b32.xlu0 %v1271, 127
        %v1275 = vpop.permute.xlu0 %1274
        %v1278 = vadd.f32 %v1206, %v1273
        %v1279 = vadd.f32 %v1207, %v1275
        %s1280 = sld [smem:[#allocation2 + $0x34]]
        %v1281 = vstv %s1280
        %v1282 = vmul.f32 %v1281, %v816
        %v1283 = vmul.f32 %v1281, %v817
        %v1284 = vmul.f32 %v1281, %v818
        %v1288 = vrot.slane %v1282, 2
        %v1289 = vrot.slane %v1283, 2
        %v1290 = vsel %vm583, %v1288, %v1289
        %v1291 = vrot.slane %v1284, 2
        %v1292 = vsel %vm583, %v1289, %v1291
        %1293 = vrot.lane.b32.xlu0 %v1290, 127
        %v1294 = vpop.permute.xlu0 %1293
        %1295 = vrot.lane.b32.xlu0 %v1292, 127
        %v1296 = vpop.permute.xlu0 %1295
        %v1299 = vadd.f32 %v1223, %v1294
        %v1300 = vadd.f32 %v1224, %v1296
        %s1301 = sld [smem:[#allocation2 + $0x58]]
        %v1302 = vstv %s1301
        %v1303 = vmul.f32 %v1302, %v816
        %v1304 = vmul.f32 %v1302, %v817
        %v1305 = vmul.f32 %v1302, %v818
        %v1309 = vrot.slane %v1303, 2
        %v1310 = vrot.slane %v1304, 2
        %v1311 = vsel %vm583, %v1309, %v1310
        %v1312 = vrot.slane %v1305, 2
        %v1313 = vsel %vm583, %v1310, %v1312
        %1314 = vrot.lane.b32.xlu0 %v1311, 127
        %v1315 = vpop.permute.xlu0 %1314
        %1316 = vrot.lane.b32.xlu0 %v1313, 127
        %v1317 = vpop.permute.xlu0 %1316
        %v1320 = vadd.f32 %v1240, %v1315
        %v1321 = vadd.f32 %v1241, %v1317
        %s1322 = sld [smem:[#allocation2 + $0x7c]]
        %v1323 = vstv %s1322
        %v1324 = vmul.f32 %v1323, %v816
        %v1325 = vmul.f32 %v1323, %v817
        %v1326 = vmul.f32 %v1323, %v818
        %v1330 = vrot.slane %v1324, 2
        %v1331 = vrot.slane %v1325, 2
        %v1332 = vsel %vm583, %v1330, %v1331
        %v1333 = vrot.slane %v1326, 2
        %v1334 = vsel %vm583, %v1331, %v1333
        %1335 = vrot.lane.b32.xlu0 %v1332, 127
        %v1336 = vpop.permute.xlu0 %1335
        %1337 = vrot.lane.b32.xlu0 %v1334, 127
        %v1338 = vpop.permute.xlu0 %1337
        %v1341 = vadd.f32 %v1257, %v1336
        %v1342 = vadd.f32 %v1258, %v1338
        %s1343 = sld [smem:[#allocation2 + $0x11]]
        %v1344 = vstv %s1343
        %v1345 = vmul.f32 %v1344, %v816
        %v1346 = vmul.f32 %v1344, %v817
        %v1347 = vmul.f32 %v1344, %v818
        %v1351 = vrot.slane %v1345, 2
        %v1352 = vrot.slane %v1346, 2
        %v1353 = vsel %vm583, %v1351, %v1352
        %v1354 = vrot.slane %v1347, 2
        %v1355 = vsel %vm583, %v1352, %v1354
        %1356 = vrot.lane.b32.xlu0 %v1353, 126
        %v1357 = vpop.permute.xlu0 %1356
        %1358 = vrot.lane.b32.xlu0 %v1355, 126
        %v1359 = vpop.permute.xlu0 %1358
        %v1362 = vadd.f32 %v1278, %v1357
        %v1363 = vadd.f32 %v1279, %v1359
        %s1364 = sld [smem:[#allocation2 + $0x35]]
        %v1365 = vstv %s1364
        %v1366 = vmul.f32 %v1365, %v816
        %v1367 = vmul.f32 %v1365, %v817
        %v1368 = vmul.f32 %v1365, %v818
        %v1372 = vrot.slane %v1366, 2
        %v1373 = vrot.slane %v1367, 2
        %v1374 = vsel %vm583, %v1372, %v1373
        %v1375 = vrot.slane %v1368, 2
        %v1376 = vsel %vm583, %v1373, %v1375
        %1377 = vrot.lane.b32.xlu0 %v1374, 126
        %v1378 = vpop.permute.xlu0 %1377
        %1379 = vrot.lane.b32.xlu0 %v1376, 126
        %v1380 = vpop.permute.xlu0 %1379
        %v1383 = vadd.f32 %v1299, %v1378
        %v1384 = vadd.f32 %v1300, %v1380
        %s1385 = sld [smem:[#allocation2 + $0x59]]
        %v1386 = vstv %s1385
        %v1387 = vmul.f32 %v1386, %v816
        %v1388 = vmul.f32 %v1386, %v817
        %v1389 = vmul.f32 %v1386, %v818
        %v1393 = vrot.slane %v1387, 2
        %v1394 = vrot.slane %v1388, 2
        %v1395 = vsel %vm583, %v1393, %v1394
        %v1396 = vrot.slane %v1389, 2
        %v1397 = vsel %vm583, %v1394, %v1396
        %1398 = vrot.lane.b32.xlu0 %v1395, 126
        %v1399 = vpop.permute.xlu0 %1398
        %1400 = vrot.lane.b32.xlu0 %v1397, 126
        %v1401 = vpop.permute.xlu0 %1400
        %v1404 = vadd.f32 %v1320, %v1399
        %v1405 = vadd.f32 %v1321, %v1401
        %s1406 = sld [smem:[#allocation2 + $0x7d]]
        %v1407 = vstv %s1406
        %v1408 = vmul.f32 %v1407, %v816
        %v1409 = vmul.f32 %v1407, %v817
        %v1410 = vmul.f32 %v1407, %v818
        %v1414 = vrot.slane %v1408, 2
        %v1415 = vrot.slane %v1409, 2
        %v1416 = vsel %vm583, %v1414, %v1415
        %v1417 = vrot.slane %v1410, 2
        %v1418 = vsel %vm583, %v1415, %v1417
        %1419 = vrot.lane.b32.xlu0 %v1416, 126
        %v1420 = vpop.permute.xlu0 %1419
        %1421 = vrot.lane.b32.xlu0 %v1418, 126
        %v1422 = vpop.permute.xlu0 %1421
        %v1425 = vadd.f32 %v1341, %v1420
        %v1426 = vadd.f32 %v1342, %v1422
        %s1427 = scalar_lea.vmem %s195, 24
        %v1428 = vld [vmem:[%s1427] sm:$0xf]
        %v1429 = vld [vmem:[%s1427 + $0x4] sm:$0xf]
        %v1430 = vld [vmem:[%s1427 + $0x8] sm:$0x1]
        %v1431 = vunpack.c.l.bf16 %v1428
        %v1432 = vunpack.c.l.bf16 %v1429
        %v1433 = vunpack.c.l.bf16 %v1430
        %s1434 = sld [smem:[#allocation2 + $0x12]]
        %v1435 = vstv %s1434
        %v1436 = vmul.f32 %v1435, %v1431
        %v1437 = vmul.f32 %v1435, %v1432
        %v1438 = vadd.f32 %v1362, %v1436
        %v1439 = vadd.f32 %v1363, %v1437
        %s1440 = sld [smem:[#allocation2 + $0x36]]
        %v1441 = vstv %s1440
        %v1442 = vmul.f32 %v1441, %v1431
        %v1443 = vmul.f32 %v1441, %v1432
        %v1444 = vadd.f32 %v1383, %v1442
        %v1445 = vadd.f32 %v1384, %v1443
        %s1446 = sld [smem:[#allocation2 + $0x5a]]
        %v1447 = vstv %s1446
        %v1448 = vmul.f32 %v1447, %v1431
        %v1449 = vmul.f32 %v1447, %v1432
        %v1450 = vadd.f32 %v1404, %v1448
        %v1451 = vadd.f32 %v1405, %v1449
        %s1452 = sld [smem:[#allocation2 + $0x7e]]
        %v1453 = vstv %s1452
        %v1454 = vmul.f32 %v1453, %v1431
        %v1455 = vmul.f32 %v1453, %v1432
        %v1456 = vadd.f32 %v1425, %v1454
        %v1457 = vadd.f32 %v1426, %v1455
        %s1458 = sld [smem:[#allocation2 + $0x13]]
        %v1459 = vstv %s1458
        %v1460 = vmul.f32 %v1459, %v1431
        %v1461 = vmul.f32 %v1459, %v1432
        %1464 = vrot.lane.b32.xlu0 %v1460, 127
        %v1465 = vpop.permute.xlu0 %1464
        %1466 = vrot.lane.b32.xlu0 %v1461, 127
        %v1467 = vpop.permute.xlu0 %1466
        %v1470 = vadd.f32 %v1438, %v1465
        %v1471 = vadd.f32 %v1439, %v1467
        %s1472 = sld [smem:[#allocation2 + $0x37]]
        %v1473 = vstv %s1472
        %v1474 = vmul.f32 %v1473, %v1431
        %v1475 = vmul.f32 %v1473, %v1432
        %1478 = vrot.lane.b32.xlu0 %v1474, 127
        %v1479 = vpop.permute.xlu0 %1478
        %1480 = vrot.lane.b32.xlu0 %v1475, 127
        %v1481 = vpop.permute.xlu0 %1480
        %v1484 = vadd.f32 %v1444, %v1479
        %v1485 = vadd.f32 %v1445, %v1481
        %s1486 = sld [smem:[#allocation2 + $0x5b]]
        %v1487 = vstv %s1486
        %v1488 = vmul.f32 %v1487, %v1431
        %v1489 = vmul.f32 %v1487, %v1432
        %1492 = vrot.lane.b32.xlu0 %v1488, 127
        %v1493 = vpop.permute.xlu0 %1492
        %1494 = vrot.lane.b32.xlu0 %v1489, 127
        %v1495 = vpop.permute.xlu0 %1494
        %v1498 = vadd.f32 %v1450, %v1493
        %v1499 = vadd.f32 %v1451, %v1495
        %s1500 = sld [smem:[#allocation2 + $0x7f]]
        %v1501 = vstv %s1500
        %v1502 = vmul.f32 %v1501, %v1431
        %v1503 = vmul.f32 %v1501, %v1432
        %1506 = vrot.lane.b32.xlu0 %v1502, 127
        %v1507 = vpop.permute.xlu0 %1506
        %1508 = vrot.lane.b32.xlu0 %v1503, 127
        %v1509 = vpop.permute.xlu0 %1508
        %v1512 = vadd.f32 %v1456, %v1507
        %v1513 = vadd.f32 %v1457, %v1509
        %s1514 = sld [smem:[#allocation2 + $0x14]]
        %v1515 = vstv %s1514
        %v1516 = vmul.f32 %v1515, %v1431
        %v1517 = vmul.f32 %v1515, %v1432
        %1520 = vrot.lane.b32.xlu0 %v1516, 126
        %v1521 = vpop.permute.xlu0 %1520
        %1522 = vrot.lane.b32.xlu0 %v1517, 126
        %v1523 = vpop.permute.xlu0 %1522
        %v1526 = vadd.f32 %v1470, %v1521
        %v1527 = vadd.f32 %v1471, %v1523
        %s1528 = sld [smem:[#allocation2 + $0x38]]
        %v1529 = vstv %s1528
        %v1530 = vmul.f32 %v1529, %v1431
        %v1531 = vmul.f32 %v1529, %v1432
        %1534 = vrot.lane.b32.xlu0 %v1530, 126
        %v1535 = vpop.permute.xlu0 %1534
        %1536 = vrot.lane.b32.xlu0 %v1531, 126
        %v1537 = vpop.permute.xlu0 %1536
        %v1540 = vadd.f32 %v1484, %v1535
        %v1541 = vadd.f32 %v1485, %v1537
        %s1542 = sld [smem:[#allocation2 + $0x5c]]
        %v1543 = vstv %s1542
        %v1544 = vmul.f32 %v1543, %v1431
        %v1545 = vmul.f32 %v1543, %v1432
        %1548 = vrot.lane.b32.xlu0 %v1544, 126
        %v1549 = vpop.permute.xlu0 %1548
        %1550 = vrot.lane.b32.xlu0 %v1545, 126
        %v1551 = vpop.permute.xlu0 %1550
        %v1554 = vadd.f32 %v1498, %v1549
        %v1555 = vadd.f32 %v1499, %v1551
        %s1556 = sld [smem:[#allocation2 + $0x80]]
        %v1557 = vstv %s1556
        %v1558 = vmul.f32 %v1557, %v1431
        %v1559 = vmul.f32 %v1557, %v1432
        %1562 = vrot.lane.b32.xlu0 %v1558, 126
        %v1563 = vpop.permute.xlu0 %1562
        %1564 = vrot.lane.b32.xlu0 %v1559, 126
        %v1565 = vpop.permute.xlu0 %1564
        %v1568 = vadd.f32 %v1512, %v1563
        %v1569 = vadd.f32 %v1513, %v1565
        %s1570 = sld [smem:[#allocation2 + $0x15]]
        %v1571 = vstv %s1570
        %v1572 = vmul.f32 %v1571, %v1431
        %v1573 = vmul.f32 %v1571, %v1432
        %v1574 = vmul.f32 %v1571, %v1433
        %v1578 = vrot.slane %v1572, 1
        %v1579 = vrot.slane %v1573, 1
        %v1580 = vsel %vm346, %v1578, %v1579
        %v1581 = vrot.slane %v1574, 1
        %v1582 = vsel %vm346, %v1579, %v1581
        %v1585 = vadd.f32 %v1526, %v1580
        %v1586 = vadd.f32 %v1527, %v1582
        %s1587 = sld [smem:[#allocation2 + $0x39]]
        %v1588 = vstv %s1587
        %v1589 = vmul.f32 %v1588, %v1431
        %v1590 = vmul.f32 %v1588, %v1432
        %v1591 = vmul.f32 %v1588, %v1433
        %v1595 = vrot.slane %v1589, 1
        %v1596 = vrot.slane %v1590, 1
        %v1597 = vsel %vm346, %v1595, %v1596
        %v1598 = vrot.slane %v1591, 1
        %v1599 = vsel %vm346, %v1596, %v1598
        %v1602 = vadd.f32 %v1540, %v1597
        %v1603 = vadd.f32 %v1541, %v1599
        %s1604 = sld [smem:[#allocation2 + $0x5d]]
        %v1605 = vstv %s1604
        %v1606 = vmul.f32 %v1605, %v1431
        %v1607 = vmul.f32 %v1605, %v1432
        %v1608 = vmul.f32 %v1605, %v1433
        %v1612 = vrot.slane %v1606, 1
        %v1613 = vrot.slane %v1607, 1
        %v1614 = vsel %vm346, %v1612, %v1613
        %v1615 = vrot.slane %v1608, 1
        %v1616 = vsel %vm346, %v1613, %v1615
        %v1619 = vadd.f32 %v1554, %v1614
        %v1620 = vadd.f32 %v1555, %v1616
        %s1621 = sld [smem:[#allocation2 + $0x81]]
        %v1622 = vstv %s1621
        %v1623 = vmul.f32 %v1622, %v1431
        %v1624 = vmul.f32 %v1622, %v1432
        %v1625 = vmul.f32 %v1622, %v1433
        %v1629 = vrot.slane %v1623, 1
        %v1630 = vrot.slane %v1624, 1
        %v1631 = vsel %vm346, %v1629, %v1630
        %v1632 = vrot.slane %v1625, 1
        %v1633 = vsel %vm346, %v1630, %v1632
        %v1636 = vadd.f32 %v1568, %v1631
        %v1637 = vadd.f32 %v1569, %v1633
        %s1638 = sld [smem:[#allocation2 + $0x16]]
        %v1639 = vstv %s1638
        %v1640 = vmul.f32 %v1639, %v1431
        %v1641 = vmul.f32 %v1639, %v1432
        %v1642 = vmul.f32 %v1639, %v1433
        %v1646 = vrot.slane %v1640, 1
        %v1647 = vrot.slane %v1641, 1
        %v1648 = vsel %vm346, %v1646, %v1647
        %v1649 = vrot.slane %v1642, 1
        %v1650 = vsel %vm346, %v1647, %v1649
        %1651 = vrot.lane.b32.xlu0 %v1648, 127
        %v1652 = vpop.permute.xlu0 %1651
        %1653 = vrot.lane.b32.xlu0 %v1650, 127
        %v1654 = vpop.permute.xlu0 %1653
        %v1657 = vadd.f32 %v1585, %v1652
        %v1658 = vadd.f32 %v1586, %v1654
        %s1659 = sld [smem:[#allocation2 + $0x3a]]
        %v1660 = vstv %s1659
        %v1661 = vmul.f32 %v1660, %v1431
        %v1662 = vmul.f32 %v1660, %v1432
        %v1663 = vmul.f32 %v1660, %v1433
        %v1667 = vrot.slane %v1661, 1
        %v1668 = vrot.slane %v1662, 1
        %v1669 = vsel %vm346, %v1667, %v1668
        %v1670 = vrot.slane %v1663, 1
        %v1671 = vsel %vm346, %v1668, %v1670
        %1672 = vrot.lane.b32.xlu0 %v1669, 127
        %v1673 = vpop.permute.xlu0 %1672
        %1674 = vrot.lane.b32.xlu0 %v1671, 127
        %v1675 = vpop.permute.xlu0 %1674
        %v1678 = vadd.f32 %v1602, %v1673
        %v1679 = vadd.f32 %v1603, %v1675
        %s1680 = sld [smem:[#allocation2 + $0x5e]]
        %v1681 = vstv %s1680
        %v1682 = vmul.f32 %v1681, %v1431
        %v1683 = vmul.f32 %v1681, %v1432
        %v1684 = vmul.f32 %v1681, %v1433
        %v1688 = vrot.slane %v1682, 1
        %v1689 = vrot.slane %v1683, 1
        %v1690 = vsel %vm346, %v1688, %v1689
        %v1691 = vrot.slane %v1684, 1
        %v1692 = vsel %vm346, %v1689, %v1691
        %1693 = vrot.lane.b32.xlu0 %v1690, 127
        %v1694 = vpop.permute.xlu0 %1693
        %1695 = vrot.lane.b32.xlu0 %v1692, 127
        %v1696 = vpop.permute.xlu0 %1695
        %v1699 = vadd.f32 %v1619, %v1694
        %v1700 = vadd.f32 %v1620, %v1696
        %s1701 = sld [smem:[#allocation2 + $0x82]]
        %v1702 = vstv %s1701
        %v1703 = vmul.f32 %v1702, %v1431
        %v1704 = vmul.f32 %v1702, %v1432
        %v1705 = vmul.f32 %v1702, %v1433
        %v1709 = vrot.slane %v1703, 1
        %v1710 = vrot.slane %v1704, 1
        %v1711 = vsel %vm346, %v1709, %v1710
        %v1712 = vrot.slane %v1705, 1
        %v1713 = vsel %vm346, %v1710, %v1712
        %1714 = vrot.lane.b32.xlu0 %v1711, 127
        %v1715 = vpop.permute.xlu0 %1714
        %1716 = vrot.lane.b32.xlu0 %v1713, 127
        %v1717 = vpop.permute.xlu0 %1716
        %v1720 = vadd.f32 %v1636, %v1715
        %v1721 = vadd.f32 %v1637, %v1717
        %s1722 = sld [smem:[#allocation2 + $0x17]]
        %v1723 = vstv %s1722
        %v1724 = vmul.f32 %v1723, %v1431
        %v1725 = vmul.f32 %v1723, %v1432
        %v1726 = vmul.f32 %v1723, %v1433
        %v1730 = vrot.slane %v1724, 1
        %v1731 = vrot.slane %v1725, 1
        %v1732 = vsel %vm346, %v1730, %v1731
        %v1733 = vrot.slane %v1726, 1
        %v1734 = vsel %vm346, %v1731, %v1733
        %1735 = vrot.lane.b32.xlu0 %v1732, 126
        %v1736 = vpop.permute.xlu0 %1735
        %1737 = vrot.lane.b32.xlu0 %v1734, 126
        %v1738 = vpop.permute.xlu0 %1737
        %v1741 = vadd.f32 %v1657, %v1736
        %v1742 = vadd.f32 %v1658, %v1738
        %s1743 = sld [smem:[#allocation2 + $0x3b]]
        %v1744 = vstv %s1743
        %v1745 = vmul.f32 %v1744, %v1431
        %v1746 = vmul.f32 %v1744, %v1432
        %v1747 = vmul.f32 %v1744, %v1433
        %v1751 = vrot.slane %v1745, 1
        %v1752 = vrot.slane %v1746, 1
        %v1753 = vsel %vm346, %v1751, %v1752
        %v1754 = vrot.slane %v1747, 1
        %v1755 = vsel %vm346, %v1752, %v1754
        %1756 = vrot.lane.b32.xlu0 %v1753, 126
        %v1757 = vpop.permute.xlu0 %1756
        %1758 = vrot.lane.b32.xlu0 %v1755, 126
        %v1759 = vpop.permute.xlu0 %1758
        %v1762 = vadd.f32 %v1678, %v1757
        %v1763 = vadd.f32 %v1679, %v1759
        %s1764 = sld [smem:[#allocation2 + $0x5f]]
        %v1765 = vstv %s1764
        %v1766 = vmul.f32 %v1765, %v1431
        %v1767 = vmul.f32 %v1765, %v1432
        %v1768 = vmul.f32 %v1765, %v1433
        %v1772 = vrot.slane %v1766, 1
        %v1773 = vrot.slane %v1767, 1
        %v1774 = vsel %vm346, %v1772, %v1773
        %v1775 = vrot.slane %v1768, 1
        %v1776 = vsel %vm346, %v1773, %v1775
        %1777 = vrot.lane.b32.xlu0 %v1774, 126
        %v1778 = vpop.permute.xlu0 %1777
        %1779 = vrot.lane.b32.xlu0 %v1776, 126
        %v1780 = vpop.permute.xlu0 %1779
        %v1783 = vadd.f32 %v1699, %v1778
        %v1784 = vadd.f32 %v1700, %v1780
        %s1785 = sld [smem:[#allocation2 + $0x83]]
        %v1786 = vstv %s1785
        %v1787 = vmul.f32 %v1786, %v1431
        %v1788 = vmul.f32 %v1786, %v1432
        %v1789 = vmul.f32 %v1786, %v1433
        %v1793 = vrot.slane %v1787, 1
        %v1794 = vrot.slane %v1788, 1
        %v1795 = vsel %vm346, %v1793, %v1794
        %v1796 = vrot.slane %v1789, 1
        %v1797 = vsel %vm346, %v1794, %v1796
        %1798 = vrot.lane.b32.xlu0 %v1795, 126
        %v1799 = vpop.permute.xlu0 %1798
        %1800 = vrot.lane.b32.xlu0 %v1797, 126
        %v1801 = vpop.permute.xlu0 %1800
        %v1804 = vadd.f32 %v1720, %v1799
        %v1805 = vadd.f32 %v1721, %v1801
        %s1806 = sld [smem:[#allocation2 + $0x18]]
        %v1807 = vstv %s1806
        %v1808 = vmul.f32 %v1807, %v1431
        %v1809 = vmul.f32 %v1807, %v1432
        %v1810 = vmul.f32 %v1807, %v1433
        %v1814 = vrot.slane %v1808, 2
        %v1815 = vrot.slane %v1809, 2
        %v1816 = vsel %vm583, %v1814, %v1815
        %v1817 = vrot.slane %v1810, 2
        %v1818 = vsel %vm583, %v1815, %v1817
        %v1821 = vadd.f32 %v1741, %v1816
        %v1822 = vadd.f32 %v1742, %v1818
        %s1823 = sld [smem:[#allocation2 + $0x3c]]
        %v1824 = vstv %s1823
        %v1825 = vmul.f32 %v1824, %v1431
        %v1826 = vmul.f32 %v1824, %v1432
        %v1827 = vmul.f32 %v1824, %v1433
        %v1831 = vrot.slane %v1825, 2
        %v1832 = vrot.slane %v1826, 2
        %v1833 = vsel %vm583, %v1831, %v1832
        %v1834 = vrot.slane %v1827, 2
        %v1835 = vsel %vm583, %v1832, %v1834
        %v1838 = vadd.f32 %v1762, %v1833
        %v1839 = vadd.f32 %v1763, %v1835
        %s1840 = sld [smem:[#allocation2 + $0x60]]
        %v1841 = vstv %s1840
        %v1842 = vmul.f32 %v1841, %v1431
        %v1843 = vmul.f32 %v1841, %v1432
        %v1844 = vmul.f32 %v1841, %v1433
        %v1848 = vrot.slane %v1842, 2
        %v1849 = vrot.slane %v1843, 2
        %v1850 = vsel %vm583, %v1848, %v1849
        %v1851 = vrot.slane %v1844, 2
        %v1852 = vsel %vm583, %v1849, %v1851
        %v1855 = vadd.f32 %v1783, %v1850
        %v1856 = vadd.f32 %v1784, %v1852
        %s1857 = sld [smem:[#allocation2 + $0x84]]
        %v1858 = vstv %s1857
        %v1859 = vmul.f32 %v1858, %v1431
        %v1860 = vmul.f32 %v1858, %v1432
        %v1861 = vmul.f32 %v1858, %v1433
        %v1865 = vrot.slane %v1859, 2
        %v1866 = vrot.slane %v1860, 2
        %v1867 = vsel %vm583, %v1865, %v1866
        %v1868 = vrot.slane %v1861, 2
        %v1869 = vsel %vm583, %v1866, %v1868
        %v1872 = vadd.f32 %v1804, %v1867
        %v1873 = vadd.f32 %v1805, %v1869
        %s1874 = sld [smem:[#allocation2 + $0x19]]
        %v1875 = vstv %s1874
        %v1876 = vmul.f32 %v1875, %v1431
        %v1877 = vmul.f32 %v1875, %v1432
        %v1878 = vmul.f32 %v1875, %v1433
        %v1882 = vrot.slane %v1876, 2
        %v1883 = vrot.slane %v1877, 2
        %v1884 = vsel %vm583, %v1882, %v1883
        %v1885 = vrot.slane %v1878, 2
        %v1886 = vsel %vm583, %v1883, %v1885
        %1887 = vrot.lane.b32.xlu0 %v1884, 127
        %v1888 = vpop.permute.xlu0 %1887
        %1889 = vrot.lane.b32.xlu0 %v1886, 127
        %v1890 = vpop.permute.xlu0 %1889
        %v1893 = vadd.f32 %v1821, %v1888
        %v1894 = vadd.f32 %v1822, %v1890
        %s1895 = sld [smem:[#allocation2 + $0x3d]]
        %v1896 = vstv %s1895
        %v1897 = vmul.f32 %v1896, %v1431
        %v1898 = vmul.f32 %v1896, %v1432
        %v1899 = vmul.f32 %v1896, %v1433
        %v1903 = vrot.slane %v1897, 2
        %v1904 = vrot.slane %v1898, 2
        %v1905 = vsel %vm583, %v1903, %v1904
        %v1906 = vrot.slane %v1899, 2
        %v1907 = vsel %vm583, %v1904, %v1906
        %1908 = vrot.lane.b32.xlu0 %v1905, 127
        %v1909 = vpop.permute.xlu0 %1908
        %1910 = vrot.lane.b32.xlu0 %v1907, 127
        %v1911 = vpop.permute.xlu0 %1910
        %v1914 = vadd.f32 %v1838, %v1909
        %v1915 = vadd.f32 %v1839, %v1911
        %s1916 = sld [smem:[#allocation2 + $0x61]]
        %v1917 = vstv %s1916
        %v1918 = vmul.f32 %v1917, %v1431
        %v1919 = vmul.f32 %v1917, %v1432
        %v1920 = vmul.f32 %v1917, %v1433
        %v1924 = vrot.slane %v1918, 2
        %v1925 = vrot.slane %v1919, 2
        %v1926 = vsel %vm583, %v1924, %v1925
        %v1927 = vrot.slane %v1920, 2
        %v1928 = vsel %vm583, %v1925, %v1927
        %1929 = vrot.lane.b32.xlu0 %v1926, 127
        %v1930 = vpop.permute.xlu0 %1929
        %1931 = vrot.lane.b32.xlu0 %v1928, 127
        %v1932 = vpop.permute.xlu0 %1931
        %v1935 = vadd.f32 %v1855, %v1930
        %v1936 = vadd.f32 %v1856, %v1932
        %s1937 = sld [smem:[#allocation2 + $0x85]]
        %v1938 = vstv %s1937
        %v1939 = vmul.f32 %v1938, %v1431
        %v1940 = vmul.f32 %v1938, %v1432
        %v1941 = vmul.f32 %v1938, %v1433
        %v1945 = vrot.slane %v1939, 2
        %v1946 = vrot.slane %v1940, 2
        %v1947 = vsel %vm583, %v1945, %v1946
        %v1948 = vrot.slane %v1941, 2
        %v1949 = vsel %vm583, %v1946, %v1948
        %1950 = vrot.lane.b32.xlu0 %v1947, 127
        %v1951 = vpop.permute.xlu0 %1950
        %1952 = vrot.lane.b32.xlu0 %v1949, 127
        %v1953 = vpop.permute.xlu0 %1952
        %v1956 = vadd.f32 %v1872, %v1951
        %v1957 = vadd.f32 %v1873, %v1953
        %s1958 = sld [smem:[#allocation2 + $0x1a]]
        %v1959 = vstv %s1958
        %v1960 = vmul.f32 %v1959, %v1431
        %v1961 = vmul.f32 %v1959, %v1432
        %v1962 = vmul.f32 %v1959, %v1433
        %v1966 = vrot.slane %v1960, 2
        %v1967 = vrot.slane %v1961, 2
        %v1968 = vsel %vm583, %v1966, %v1967
        %v1969 = vrot.slane %v1962, 2
        %v1970 = vsel %vm583, %v1967, %v1969
        %1971 = vrot.lane.b32.xlu0 %v1968, 126
        %v1972 = vpop.permute.xlu0 %1971
        %1973 = vrot.lane.b32.xlu0 %v1970, 126
        %v1974 = vpop.permute.xlu0 %1973
        %v1977 = vadd.f32 %v1893, %v1972
        %v1978 = vadd.f32 %v1894, %v1974
        %s1979 = sld [smem:[#allocation2 + $0x3e]]
        %v1980 = vstv %s1979
        %v1981 = vmul.f32 %v1980, %v1431
        %v1982 = vmul.f32 %v1980, %v1432
        %v1983 = vmul.f32 %v1980, %v1433
        %v1987 = vrot.slane %v1981, 2
        %v1988 = vrot.slane %v1982, 2
        %v1989 = vsel %vm583, %v1987, %v1988
        %v1990 = vrot.slane %v1983, 2
        %v1991 = vsel %vm583, %v1988, %v1990
        %1992 = vrot.lane.b32.xlu0 %v1989, 126
        %v1993 = vpop.permute.xlu0 %1992
        %1994 = vrot.lane.b32.xlu0 %v1991, 126
        %v1995 = vpop.permute.xlu0 %1994
        %v1998 = vadd.f32 %v1914, %v1993
        %v1999 = vadd.f32 %v1915, %v1995
        %s2000 = sld [smem:[#allocation2 + $0x62]]
        %v2001 = vstv %s2000
        %v2002 = vmul.f32 %v2001, %v1431
        %v2003 = vmul.f32 %v2001, %v1432
        %v2004 = vmul.f32 %v2001, %v1433
        %v2008 = vrot.slane %v2002, 2
        %v2009 = vrot.slane %v2003, 2
        %v2010 = vsel %vm583, %v2008, %v2009
        %v2011 = vrot.slane %v2004, 2
        %v2012 = vsel %vm583, %v2009, %v2011
        %2013 = vrot.lane.b32.xlu0 %v2010, 126
        %v2014 = vpop.permute.xlu0 %2013
        %2015 = vrot.lane.b32.xlu0 %v2012, 126
        %v2016 = vpop.permute.xlu0 %2015
        %v2019 = vadd.f32 %v1935, %v2014
        %v2020 = vadd.f32 %v1936, %v2016
        %s2021 = sld [smem:[#allocation2 + $0x86]]
        %v2022 = vstv %s2021
        %v2023 = vmul.f32 %v2022, %v1431
        %v2024 = vmul.f32 %v2022, %v1432
        %v2025 = vmul.f32 %v2022, %v1433
        %v2029 = vrot.slane %v2023, 2
        %v2030 = vrot.slane %v2024, 2
        %v2031 = vsel %vm583, %v2029, %v2030
        %v2032 = vrot.slane %v2025, 2
        %v2033 = vsel %vm583, %v2030, %v2032
        %2034 = vrot.lane.b32.xlu0 %v2031, 126
        %v2035 = vpop.permute.xlu0 %2034
        %2036 = vrot.lane.b32.xlu0 %v2033, 126
        %v2037 = vpop.permute.xlu0 %2036
        %v2040 = vadd.f32 %v1956, %v2035
        %v2041 = vadd.f32 %v1957, %v2037
        %s2042 = scalar_lea.vmem %s195, 36
        %v2043 = vld [vmem:[%s2042] sm:$0xf]
        %v2044 = vld [vmem:[%s2042 + $0x4] sm:$0xf]
        %v2045 = vld [vmem:[%s2042 + $0x8] sm:$0x1]
        %v2046 = vunpack.c.l.bf16 %v2043
        %v2047 = vunpack.c.l.bf16 %v2044
        %v2048 = vunpack.c.l.bf16 %v2045
        %s2049 = sld [smem:[#allocation2 + $0x1b]]
        %v2050 = vstv %s2049
        %v2051 = vmul.f32 %v2050, %v2046
        %v2052 = vmul.f32 %v2050, %v2047
        %v2053 = vadd.f32 %v1977, %v2051
        %v2054 = vadd.f32 %v1978, %v2052
        %s2055 = sld [smem:[#allocation2 + $0x3f]]
        %v2056 = vstv %s2055
        %v2057 = vmul.f32 %v2056, %v2046
        %v2058 = vmul.f32 %v2056, %v2047
        %v2059 = vadd.f32 %v1998, %v2057
        %v2060 = vadd.f32 %v1999, %v2058
        %s2061 = sld [smem:[#allocation2 + $0x63]]
        %v2062 = vstv %s2061
        %v2063 = vmul.f32 %v2062, %v2046
        %v2064 = vmul.f32 %v2062, %v2047
        %v2065 = vadd.f32 %v2019, %v2063
        %v2066 = vadd.f32 %v2020, %v2064
        %s2067 = sld [smem:[#allocation2 + $0x87]]
        %v2068 = vstv %s2067
        %v2069 = vmul.f32 %v2068, %v2046
        %v2070 = vmul.f32 %v2068, %v2047
        %v2071 = vadd.f32 %v2040, %v2069
        %v2072 = vadd.f32 %v2041, %v2070
        %s2073 = sld [smem:[#allocation2 + $0x1c]]
        %v2074 = vstv %s2073
        %v2075 = vmul.f32 %v2074, %v2046
        %v2076 = vmul.f32 %v2074, %v2047
        %2079 = vrot.lane.b32.xlu0 %v2075, 127
        %v2080 = vpop.permute.xlu0 %2079
        %2081 = vrot.lane.b32.xlu0 %v2076, 127
        %v2082 = vpop.permute.xlu0 %2081
        %v2085 = vadd.f32 %v2053, %v2080
        %v2086 = vadd.f32 %v2054, %v2082
        %s2087 = sld [smem:[#allocation2 + $0x40]]
        %v2088 = vstv %s2087
        %v2089 = vmul.f32 %v2088, %v2046
        %v2090 = vmul.f32 %v2088, %v2047
        %2093 = vrot.lane.b32.xlu0 %v2089, 127
        %v2094 = vpop.permute.xlu0 %2093
        %2095 = vrot.lane.b32.xlu0 %v2090, 127
        %v2096 = vpop.permute.xlu0 %2095
        %v2099 = vadd.f32 %v2059, %v2094
        %v2100 = vadd.f32 %v2060, %v2096
        %s2101 = sld [smem:[#allocation2 + $0x64]]
        %v2102 = vstv %s2101
        %v2103 = vmul.f32 %v2102, %v2046
        %v2104 = vmul.f32 %v2102, %v2047
        %2107 = vrot.lane.b32.xlu0 %v2103, 127
        %v2108 = vpop.permute.xlu0 %2107
        %2109 = vrot.lane.b32.xlu0 %v2104, 127
        %v2110 = vpop.permute.xlu0 %2109
        %v2113 = vadd.f32 %v2065, %v2108
        %v2114 = vadd.f32 %v2066, %v2110
        %s2115 = sld [smem:[#allocation2 + $0x88]]
        %v2116 = vstv %s2115
        %v2117 = vmul.f32 %v2116, %v2046
        %v2118 = vmul.f32 %v2116, %v2047
        %2121 = vrot.lane.b32.xlu0 %v2117, 127
        %v2122 = vpop.permute.xlu0 %2121
        %2123 = vrot.lane.b32.xlu0 %v2118, 127
        %v2124 = vpop.permute.xlu0 %2123
        %v2127 = vadd.f32 %v2071, %v2122
        %v2128 = vadd.f32 %v2072, %v2124
        %s2129 = sld [smem:[#allocation2 + $0x1d]]
        %v2130 = vstv %s2129
        %v2131 = vmul.f32 %v2130, %v2046
        %v2132 = vmul.f32 %v2130, %v2047
        %2135 = vrot.lane.b32.xlu0 %v2131, 126
        %v2136 = vpop.permute.xlu0 %2135
        %2137 = vrot.lane.b32.xlu0 %v2132, 126
        %v2138 = vpop.permute.xlu0 %2137
        %v2141 = vadd.f32 %v2085, %v2136
        %v2142 = vadd.f32 %v2086, %v2138
        %s2143 = sld [smem:[#allocation2 + $0x41]]
        %v2144 = vstv %s2143
        %v2145 = vmul.f32 %v2144, %v2046
        %v2146 = vmul.f32 %v2144, %v2047
        %2149 = vrot.lane.b32.xlu0 %v2145, 126
        %v2150 = vpop.permute.xlu0 %2149
        %2151 = vrot.lane.b32.xlu0 %v2146, 126
        %v2152 = vpop.permute.xlu0 %2151
        %v2155 = vadd.f32 %v2099, %v2150
        %v2156 = vadd.f32 %v2100, %v2152
        %s2157 = sld [smem:[#allocation2 + $0x65]]
        %v2158 = vstv %s2157
        %v2159 = vmul.f32 %v2158, %v2046
        %v2160 = vmul.f32 %v2158, %v2047
        %2163 = vrot.lane.b32.xlu0 %v2159, 126
        %v2164 = vpop.permute.xlu0 %2163
        %2165 = vrot.lane.b32.xlu0 %v2160, 126
        %v2166 = vpop.permute.xlu0 %2165
        %v2169 = vadd.f32 %v2113, %v2164
        %v2170 = vadd.f32 %v2114, %v2166
        %s2171 = sld [smem:[#allocation2 + $0x89]]
        %v2172 = vstv %s2171
        %v2173 = vmul.f32 %v2172, %v2046
        %v2174 = vmul.f32 %v2172, %v2047
        %2177 = vrot.lane.b32.xlu0 %v2173, 126
        %v2178 = vpop.permute.xlu0 %2177
        %2179 = vrot.lane.b32.xlu0 %v2174, 126
        %v2180 = vpop.permute.xlu0 %2179
        %v2183 = vadd.f32 %v2127, %v2178
        %v2184 = vadd.f32 %v2128, %v2180
        %s2185 = sld [smem:[#allocation2 + $0x1e]]
        %v2186 = vstv %s2185
        %v2187 = vmul.f32 %v2186, %v2046
        %v2188 = vmul.f32 %v2186, %v2047
        %v2189 = vmul.f32 %v2186, %v2048
        %v2193 = vrot.slane %v2187, 1
        %v2194 = vrot.slane %v2188, 1
        %v2195 = vsel %vm346, %v2193, %v2194
        %v2196 = vrot.slane %v2189, 1
        %v2197 = vsel %vm346, %v2194, %v2196
        %v2200 = vadd.f32 %v2141, %v2195
        %v2201 = vadd.f32 %v2142, %v2197
        %s2202 = sld [smem:[#allocation2 + $0x42]]
        %v2203 = vstv %s2202
        %v2204 = vmul.f32 %v2203, %v2046
        %v2205 = vmul.f32 %v2203, %v2047
        %v2206 = vmul.f32 %v2203, %v2048
        %v2210 = vrot.slane %v2204, 1
        %v2211 = vrot.slane %v2205, 1
        %v2212 = vsel %vm346, %v2210, %v2211
        %v2213 = vrot.slane %v2206, 1
        %v2214 = vsel %vm346, %v2211, %v2213
        %v2217 = vadd.f32 %v2155, %v2212
        %v2218 = vadd.f32 %v2156, %v2214
        %s2219 = sld [smem:[#allocation2 + $0x66]]
        %v2220 = vstv %s2219
        %v2221 = vmul.f32 %v2220, %v2046
        %v2222 = vmul.f32 %v2220, %v2047
        %v2223 = vmul.f32 %v2220, %v2048
        %v2227 = vrot.slane %v2221, 1
        %v2228 = vrot.slane %v2222, 1
        %v2229 = vsel %vm346, %v2227, %v2228
        %v2230 = vrot.slane %v2223, 1
        %v2231 = vsel %vm346, %v2228, %v2230
        %v2234 = vadd.f32 %v2169, %v2229
        %v2235 = vadd.f32 %v2170, %v2231
        %s2236 = sld [smem:[#allocation2 + $0x8a]]
        %v2237 = vstv %s2236
        %v2238 = vmul.f32 %v2237, %v2046
        %v2239 = vmul.f32 %v2237, %v2047
        %v2240 = vmul.f32 %v2237, %v2048
        %v2244 = vrot.slane %v2238, 1
        %v2245 = vrot.slane %v2239, 1
        %v2246 = vsel %vm346, %v2244, %v2245
        %v2247 = vrot.slane %v2240, 1
        %v2248 = vsel %vm346, %v2245, %v2247
        %v2251 = vadd.f32 %v2183, %v2246
        %v2252 = vadd.f32 %v2184, %v2248
        %s2253 = sld [smem:[#allocation2 + $0x1f]]
        %v2254 = vstv %s2253
        %v2255 = vmul.f32 %v2254, %v2046
        %v2256 = vmul.f32 %v2254, %v2047
        %v2257 = vmul.f32 %v2254, %v2048
        %v2261 = vrot.slane %v2255, 1
        %v2262 = vrot.slane %v2256, 1
        %v2263 = vsel %vm346, %v2261, %v2262
        %v2264 = vrot.slane %v2257, 1
        %v2265 = vsel %vm346, %v2262, %v2264
        %2266 = vrot.lane.b32.xlu0 %v2263, 127
        %v2267 = vpop.permute.xlu0 %2266
        %2268 = vrot.lane.b32.xlu0 %v2265, 127
        %v2269 = vpop.permute.xlu0 %2268
        %v2272 = vadd.f32 %v2200, %v2267
        %v2273 = vadd.f32 %v2201, %v2269
        %s2274 = sld [smem:[#allocation2 + $0x43]]
        %v2275 = vstv %s2274
        %v2276 = vmul.f32 %v2275, %v2046
        %v2277 = vmul.f32 %v2275, %v2047
        %v2278 = vmul.f32 %v2275, %v2048
        %v2282 = vrot.slane %v2276, 1
        %v2283 = vrot.slane %v2277, 1
        %v2284 = vsel %vm346, %v2282, %v2283
        %v2285 = vrot.slane %v2278, 1
        %v2286 = vsel %vm346, %v2283, %v2285
        %2287 = vrot.lane.b32.xlu0 %v2284, 127
        %v2288 = vpop.permute.xlu0 %2287
        %2289 = vrot.lane.b32.xlu0 %v2286, 127
        %v2290 = vpop.permute.xlu0 %2289
        %v2293 = vadd.f32 %v2217, %v2288
        %v2294 = vadd.f32 %v2218, %v2290
        %s2295 = sld [smem:[#allocation2 + $0x67]]
        %v2296 = vstv %s2295
        %v2297 = vmul.f32 %v2296, %v2046
        %v2298 = vmul.f32 %v2296, %v2047
        %v2299 = vmul.f32 %v2296, %v2048
        %v2303 = vrot.slane %v2297, 1
        %v2304 = vrot.slane %v2298, 1
        %v2305 = vsel %vm346, %v2303, %v2304
        %v2306 = vrot.slane %v2299, 1
        %v2307 = vsel %vm346, %v2304, %v2306
        %2308 = vrot.lane.b32.xlu0 %v2305, 127
        %v2309 = vpop.permute.xlu0 %2308
        %2310 = vrot.lane.b32.xlu0 %v2307, 127
        %v2311 = vpop.permute.xlu0 %2310
        %v2314 = vadd.f32 %v2234, %v2309
        %v2315 = vadd.f32 %v2235, %v2311
        %s2316 = sld [smem:[#allocation2 + $0x8b]]
        %v2317 = vstv %s2316
        %v2318 = vmul.f32 %v2317, %v2046
        %v2319 = vmul.f32 %v2317, %v2047
        %v2320 = vmul.f32 %v2317, %v2048
        %v2324 = vrot.slane %v2318, 1
        %v2325 = vrot.slane %v2319, 1
        %v2326 = vsel %vm346, %v2324, %v2325
        %v2327 = vrot.slane %v2320, 1
        %v2328 = vsel %vm346, %v2325, %v2327
        %2329 = vrot.lane.b32.xlu0 %v2326, 127
        %v2330 = vpop.permute.xlu0 %2329
        %2331 = vrot.lane.b32.xlu0 %v2328, 127
        %v2332 = vpop.permute.xlu0 %2331
        %v2335 = vadd.f32 %v2251, %v2330
        %v2336 = vadd.f32 %v2252, %v2332
        %s2337 = sld [smem:[#allocation2 + $0x20]]
        %v2338 = vstv %s2337
        %v2339 = vmul.f32 %v2338, %v2046
        %v2340 = vmul.f32 %v2338, %v2047
        %v2341 = vmul.f32 %v2338, %v2048
        %v2345 = vrot.slane %v2339, 1
        %v2346 = vrot.slane %v2340, 1
        %v2347 = vsel %vm346, %v2345, %v2346
        %v2348 = vrot.slane %v2341, 1
        %v2349 = vsel %vm346, %v2346, %v2348
        %2350 = vrot.lane.b32.xlu0 %v2347, 126
        %v2351 = vpop.permute.xlu0 %2350
        %2352 = vrot.lane.b32.xlu0 %v2349, 126
        %v2353 = vpop.permute.xlu0 %2352
        %v2356 = vadd.f32 %v2272, %v2351
        %v2357 = vadd.f32 %v2273, %v2353
        %s2358 = sld [smem:[#allocation2 + $0x44]]
        %v2359 = vstv %s2358
        %v2360 = vmul.f32 %v2359, %v2046
        %v2361 = vmul.f32 %v2359, %v2047
        %v2362 = vmul.f32 %v2359, %v2048
        %v2366 = vrot.slane %v2360, 1
        %v2367 = vrot.slane %v2361, 1
        %v2368 = vsel %vm346, %v2366, %v2367
        %v2369 = vrot.slane %v2362, 1
        %v2370 = vsel %vm346, %v2367, %v2369
        %2371 = vrot.lane.b32.xlu0 %v2368, 126
        %v2372 = vpop.permute.xlu0 %2371
        %2373 = vrot.lane.b32.xlu0 %v2370, 126
        %v2374 = vpop.permute.xlu0 %2373
        %v2377 = vadd.f32 %v2293, %v2372
        %v2378 = vadd.f32 %v2294, %v2374
        %s2379 = sld [smem:[#allocation2 + $0x68]]
        %v2380 = vstv %s2379
        %v2381 = vmul.f32 %v2380, %v2046
        %v2382 = vmul.f32 %v2380, %v2047
        %v2383 = vmul.f32 %v2380, %v2048
        %v2387 = vrot.slane %v2381, 1
        %v2388 = vrot.slane %v2382, 1
        %v2389 = vsel %vm346, %v2387, %v2388
        %v2390 = vrot.slane %v2383, 1
        %v2391 = vsel %vm346, %v2388, %v2390
        %2392 = vrot.lane.b32.xlu0 %v2389, 126
        %v2393 = vpop.permute.xlu0 %2392
        %2394 = vrot.lane.b32.xlu0 %v2391, 126
        %v2395 = vpop.permute.xlu0 %2394
        %v2398 = vadd.f32 %v2314, %v2393
        %v2399 = vadd.f32 %v2315, %v2395
        %s2400 = sld [smem:[#allocation2 + $0x8c]]
        %v2401 = vstv %s2400
        %v2402 = vmul.f32 %v2401, %v2046
        %v2403 = vmul.f32 %v2401, %v2047
        %v2404 = vmul.f32 %v2401, %v2048
        %v2408 = vrot.slane %v2402, 1
        %v2409 = vrot.slane %v2403, 1
        %v2410 = vsel %vm346, %v2408, %v2409
        %v2411 = vrot.slane %v2404, 1
        %v2412 = vsel %vm346, %v2409, %v2411
        %2413 = vrot.lane.b32.xlu0 %v2410, 126
        %v2414 = vpop.permute.xlu0 %2413
        %2415 = vrot.lane.b32.xlu0 %v2412, 126
        %v2416 = vpop.permute.xlu0 %2415
        %v2419 = vadd.f32 %v2335, %v2414
        %v2420 = vadd.f32 %v2336, %v2416
        %s2421 = sld [smem:[#allocation2 + $0x21]]
        %v2422 = vstv %s2421
        %v2423 = vmul.f32 %v2422, %v2046
        %v2424 = vmul.f32 %v2422, %v2047
        %v2425 = vmul.f32 %v2422, %v2048
        %v2429 = vrot.slane %v2423, 2
        %v2430 = vrot.slane %v2424, 2
        %v2431 = vsel %vm583, %v2429, %v2430
        %v2432 = vrot.slane %v2425, 2
        %v2433 = vsel %vm583, %v2430, %v2432
        %v2436 = vadd.f32 %v2356, %v2431
        %v2437 = vadd.f32 %v2357, %v2433
        %s2438 = sld [smem:[#allocation2 + $0x45]]
        %v2439 = vstv %s2438
        %v2440 = vmul.f32 %v2439, %v2046
        %v2441 = vmul.f32 %v2439, %v2047
        %v2442 = vmul.f32 %v2439, %v2048
        %v2446 = vrot.slane %v2440, 2
        %v2447 = vrot.slane %v2441, 2
        %v2448 = vsel %vm583, %v2446, %v2447
        %v2449 = vrot.slane %v2442, 2
        %v2450 = vsel %vm583, %v2447, %v2449
        %v2453 = vadd.f32 %v2377, %v2448
        %v2454 = vadd.f32 %v2378, %v2450
        %s2455 = sld [smem:[#allocation2 + $0x69]]
        %v2456 = vstv %s2455
        %v2457 = vmul.f32 %v2456, %v2046
        %v2458 = vmul.f32 %v2456, %v2047
        %v2459 = vmul.f32 %v2456, %v2048
        %v2463 = vrot.slane %v2457, 2
        %v2464 = vrot.slane %v2458, 2
        %v2465 = vsel %vm583, %v2463, %v2464
        %v2466 = vrot.slane %v2459, 2
        %v2467 = vsel %vm583, %v2464, %v2466
        %v2470 = vadd.f32 %v2398, %v2465
        %v2471 = vadd.f32 %v2399, %v2467
        %s2472 = sld [smem:[#allocation2 + $0x8d]]
        %v2473 = vstv %s2472
        %v2474 = vmul.f32 %v2473, %v2046
        %v2475 = vmul.f32 %v2473, %v2047
        %v2476 = vmul.f32 %v2473, %v2048
        %v2480 = vrot.slane %v2474, 2
        %v2481 = vrot.slane %v2475, 2
        %v2482 = vsel %vm583, %v2480, %v2481
        %v2483 = vrot.slane %v2476, 2
        %v2484 = vsel %vm583, %v2481, %v2483
        %v2487 = vadd.f32 %v2419, %v2482
        %v2488 = vadd.f32 %v2420, %v2484
        %s2489 = sld [smem:[#allocation2 + $0x22]]
        %v2490 = vstv %s2489
        %v2491 = vmul.f32 %v2490, %v2046
        %v2492 = vmul.f32 %v2490, %v2047
        %v2493 = vmul.f32 %v2490, %v2048
        %v2497 = vrot.slane %v2491, 2
        %v2498 = vrot.slane %v2492, 2
        %v2499 = vsel %vm583, %v2497, %v2498
        %v2500 = vrot.slane %v2493, 2
        %v2501 = vsel %vm583, %v2498, %v2500
        %2502 = vrot.lane.b32.xlu0 %v2499, 127
        %v2503 = vpop.permute.xlu0 %2502
        %2504 = vrot.lane.b32.xlu0 %v2501, 127
        %v2505 = vpop.permute.xlu0 %2504
        %v2508 = vadd.f32 %v2436, %v2503
        %v2509 = vadd.f32 %v2437, %v2505
        %s2510 = sld [smem:[#allocation2 + $0x46]]
        %v2511 = vstv %s2510
        %v2512 = vmul.f32 %v2511, %v2046
        %v2513 = vmul.f32 %v2511, %v2047
        %v2514 = vmul.f32 %v2511, %v2048
        %v2518 = vrot.slane %v2512, 2
        %v2519 = vrot.slane %v2513, 2
        %v2520 = vsel %vm583, %v2518, %v2519
        %v2521 = vrot.slane %v2514, 2
        %v2522 = vsel %vm583, %v2519, %v2521
        %2523 = vrot.lane.b32.xlu0 %v2520, 127
        %v2524 = vpop.permute.xlu0 %2523
        %2525 = vrot.lane.b32.xlu0 %v2522, 127
        %v2526 = vpop.permute.xlu0 %2525
        %v2529 = vadd.f32 %v2453, %v2524
        %v2530 = vadd.f32 %v2454, %v2526
        %s2531 = sld [smem:[#allocation2 + $0x6a]]
        %v2532 = vstv %s2531
        %v2533 = vmul.f32 %v2532, %v2046
        %v2534 = vmul.f32 %v2532, %v2047
        %v2535 = vmul.f32 %v2532, %v2048
        %v2539 = vrot.slane %v2533, 2
        %v2540 = vrot.slane %v2534, 2
        %v2541 = vsel %vm583, %v2539, %v2540
        %v2542 = vrot.slane %v2535, 2
        %v2543 = vsel %vm583, %v2540, %v2542
        %2544 = vrot.lane.b32.xlu0 %v2541, 127
        %v2545 = vpop.permute.xlu0 %2544
        %2546 = vrot.lane.b32.xlu0 %v2543, 127
        %v2547 = vpop.permute.xlu0 %2546
        %v2550 = vadd.f32 %v2470, %v2545
        %v2551 = vadd.f32 %v2471, %v2547
        %s2552 = sld [smem:[#allocation2 + $0x8e]]
        %v2553 = vstv %s2552
        %v2554 = vmul.f32 %v2553, %v2046
        %v2555 = vmul.f32 %v2553, %v2047
        %v2556 = vmul.f32 %v2553, %v2048
        %v2560 = vrot.slane %v2554, 2
        %v2561 = vrot.slane %v2555, 2
        %v2562 = vsel %vm583, %v2560, %v2561
        %v2563 = vrot.slane %v2556, 2
        %v2564 = vsel %vm583, %v2561, %v2563
        %2565 = vrot.lane.b32.xlu0 %v2562, 127
        %v2566 = vpop.permute.xlu0 %2565
        %2567 = vrot.lane.b32.xlu0 %v2564, 127
        %v2568 = vpop.permute.xlu0 %2567
        %v2571 = vadd.f32 %v2487, %v2566
        %v2572 = vadd.f32 %v2488, %v2568
        %s2573 = sld [smem:[#allocation2 + $0x23]]
        %v2574 = vstv %s2573
        %v2575 = vmul.f32 %v2574, %v2046
        %v2576 = vmul.f32 %v2574, %v2047
        %v2577 = vmul.f32 %v2574, %v2048
        %v2581 = vrot.slane %v2575, 2
        %v2582 = vrot.slane %v2576, 2
        %v2583 = vsel %vm583, %v2581, %v2582
        %v2584 = vrot.slane %v2577, 2
        %v2585 = vsel %vm583, %v2582, %v2584
        %2586 = vrot.lane.b32.xlu0 %v2583, 126
        %v2587 = vpop.permute.xlu0 %2586
        %2588 = vrot.lane.b32.xlu0 %v2585, 126
        %v2589 = vpop.permute.xlu0 %2588
        %v2592 = vadd.f32 %v2508, %v2587
        %v2593 = vadd.f32 %v2509, %v2589
        %s2594 = sld [smem:[#allocation2 + $0x47]]
        %v2595 = vstv %s2594
        %v2596 = vmul.f32 %v2595, %v2046
        %v2597 = vmul.f32 %v2595, %v2047
        %v2598 = vmul.f32 %v2595, %v2048
        %v2602 = vrot.slane %v2596, 2
        %v2603 = vrot.slane %v2597, 2
        %v2604 = vsel %vm583, %v2602, %v2603
        %v2605 = vrot.slane %v2598, 2
        %v2606 = vsel %vm583, %v2603, %v2605
        %2607 = vrot.lane.b32.xlu0 %v2604, 126
        %v2608 = vpop.permute.xlu0 %2607
        %2609 = vrot.lane.b32.xlu0 %v2606, 126
        %v2610 = vpop.permute.xlu0 %2609
        %v2613 = vadd.f32 %v2529, %v2608
        %v2614 = vadd.f32 %v2530, %v2610
        %s2615 = sld [smem:[#allocation2 + $0x6b]]
        %v2616 = vstv %s2615
        %v2617 = vmul.f32 %v2616, %v2046
        %v2618 = vmul.f32 %v2616, %v2047
        %v2619 = vmul.f32 %v2616, %v2048
        %v2623 = vrot.slane %v2617, 2
        %v2624 = vrot.slane %v2618, 2
        %v2625 = vsel %vm583, %v2623, %v2624
        %v2626 = vrot.slane %v2619, 2
        %v2627 = vsel %vm583, %v2624, %v2626
        %2628 = vrot.lane.b32.xlu0 %v2625, 126
        %v2629 = vpop.permute.xlu0 %2628
        %2630 = vrot.lane.b32.xlu0 %v2627, 126
        %v2631 = vpop.permute.xlu0 %2630
        %v2634 = vadd.f32 %v2550, %v2629
        %v2635 = vadd.f32 %v2551, %v2631
        %s2636 = sld [smem:[#allocation2 + $0x8f]]
        %v2637 = vstv %s2636
        %v2638 = vmul.f32 %v2637, %v2046
        %v2639 = vmul.f32 %v2637, %v2047
        %v2640 = vmul.f32 %v2637, %v2048
        %v2644 = vrot.slane %v2638, 2
        %v2645 = vrot.slane %v2639, 2
        %v2646 = vsel %vm583, %v2644, %v2645
        %v2647 = vrot.slane %v2640, 2
        %v2648 = vsel %vm583, %v2645, %v2647
        %2649 = vrot.lane.b32.xlu0 %v2646, 126
        %v2650 = vpop.permute.xlu0 %2649
        %2651 = vrot.lane.b32.xlu0 %v2648, 126
        %v2652 = vpop.permute.xlu0 %2651
        %v2655 = vadd.f32 %v2571, %v2650
        %v2656 = vadd.f32 %v2572, %v2652
        %s2657 = sld [smem:[#allocation5]]
        %v2658 = vstv %s2657
        %v2659 = vadd.f32 %v2592, %v2658
        %v2660 = vadd.f32 %v2593, %v2658
        %v2661 = vmax.f32 %v2659, 0.0
        %v2662 = vmax.f32 %v2660, 0.0
        %vm2663 = vcmask 130048
        %2664 = vst.msk [vmem:[%s190] sm:$0xff] %vm2663, %v2661
        %2665 = vst.msk [vmem:[%s190 + $0x8] sm:$0xff] %vm2663, %v2662
        %s2666 = sld [smem:[#allocation5 + $0x1]]
        %v2667 = vstv %s2666
        %v2668 = vadd.f32 %v2613, %v2667
        %v2669 = vadd.f32 %v2614, %v2667
        %v2670 = vmax.f32 %v2668, 0.0
        %v2671 = vmax.f32 %v2669, 0.0
        %s2672 = scalar_lea.vmem %s190, 16 [#allocation7]
        %2673 = vst.msk [vmem:[%s2672] sm:$0xff] %vm2663, %v2670
        %2674 = vst.msk [vmem:[%s2672 + $0x8] sm:$0xff] %vm2663, %v2671
        %s2675 = sld [smem:[#allocation5 + $0x2]]
        %v2676 = vstv %s2675
        %v2677 = vadd.f32 %v2634, %v2676
        %v2678 = vadd.f32 %v2635, %v2676
        %v2679 = vmax.f32 %v2677, 0.0
        %v2680 = vmax.f32 %v2678, 0.0
        %s2681 = scalar_lea.vmem %s190, 32 [#allocation7]
        %2682 = vst.msk [vmem:[%s2681] sm:$0xff] %vm2663, %v2679
        %2683 = vst.msk [vmem:[%s2681 + $0x8] sm:$0xff] %vm2663, %v2680
        %s2684 = sld [smem:[#allocation5 + $0x3]]
        %v2685 = vstv %s2684
        %v2686 = vadd.f32 %v2655, %v2685
        %v2687 = vadd.f32 %v2656, %v2685
        %v2688 = vmax.f32 %v2686, 0.0
        %v2689 = vmax.f32 %v2687, 0.0
        %s2690 = scalar_lea.vmem %s190, 48 [#allocation7]
        %2691 = vst.msk [vmem:[%s2690] sm:$0xff] %vm2663, %v2688
        %2692 = vst.msk [vmem:[%s2690 + $0x8] sm:$0xff] %vm2663, %v2689
        %s2693 = sand.u32 %s95, 1
        %s2694 = scalar_lea.sflag [#allocation3], %s2693
        %s2695 = sand.u32 %s95, 1
        %s2696 = smul.addr %s2695, 64
        %s2697 = scalar_lea.vmem [#allocation7], %s2696
        // Predicated region
        $region41: #{tpu_custom_call.1} parent=31 // pred_check
          %p2698 = pneg %p105
        $region42: #{tpu_custom_call.1} parent=31 // pred_check_branch
          %2700 = sbr.rel (%p2698) target = $region44
        $region43: #{tpu_custom_call.1} parent=31 // pred_region
          %s2702 = ssub.s32 1024, 1024
          %2703 = vsyncadd %s2694, %s2702
          %s2704 = smul.addr %s19, 8
          %s2705 = smul.addr %s2704, 128
          %s2706 = scalar_lea.hbm %s3, %s2705
          %s2707 = sshll.u32 %s2697, 4
          %s2708 = int_to_ptr.vmem [resolvable:$true] %s2707
          %2713 = dma.vmem_to_hbm [thread:$0]  %s2708, 1024, %s2706, %s2694, 128, 128, 8
        $region44: #{tpu_custom_call.1} parent=31 // pred_fallthru
          _
      $region32: #{tpu_custom_call.1} parent=5 // pred_fallthru
        _
      %p2714 = scmp.le.s32.totalorder 2, %s14
      // Predicated region
      $region45: #{tpu_custom_call.1} parent=5 // pred_check
        %p2715 = pneg %p2714
      $region46: #{tpu_custom_call.1} parent=5 // pred_check_branch
        %2717 = sbr.rel (%p2715) target = $region48
      $region47: #{tpu_custom_call.1} parent=5 // pred_region
        %s2718 = ssub.s32 %s14, 2
        // Predicated region
        $region49: #{tpu_custom_call.1} parent=47 // pred_check
          %p2719 = pneg %p111
        $region50: #{tpu_custom_call.1} parent=47 // pred_check_branch
          %2721 = sbr.rel (%p2719) target = $region52
        $region51: #{tpu_custom_call.1} parent=47 // pred_region
          %s2722 = sand.u32 %s96, 1
          %s2723 = scalar_lea.sflag [#allocation3], %s2722
          %s2724 = sand.u32 %s96, 1
          %s2725 = smul.addr %s2724, 64
          %s2726 = scalar_lea.vmem [#allocation7], %s2725
          %2727 = dma.done %s2723, 1024
        $region52: #{tpu_custom_call.1} parent=47 // pred_fallthru
          _
      $region48: #{tpu_custom_call.1} parent=5 // pred_fallthru
        _
    $region6: #{tpu_custom_call.1} parent=1 // loop_footer
      %s18 = sadd.s32 1, %s14
    $region7: #{tpu_custom_call.1} parent=1 // loop_footer_branch
      %13 = sbr.rel target = $region3
    $region8: #{tpu_custom_call.1} parent=1 // loop_exit
      _
    %2728 = vsyncpa [#allocation3], 1
    %s2729 = scalar_lea.sflag [#allocation3], 1
    %2730 = vsyncpa %s2729, 1
    %2731 = vsyncpa [#allocation4], 1
    %s2732 = scalar_lea.sflag [#allocation4], 1
    %2733 = vsyncpa %s2732, 1
    %2734 = vsyncpa [#allocation6], 1

</llo_original>
